<compile_context>
chip_gen: v7x
topology: tpu7x:2x2x1
jax: 0.10.0
libtpu: 0.0.40
codegen_flags: <defaults>
</compile_context>

<pallas_src>
import functools

import jax
import jax.numpy as jnp
from jax import lax
from jax.experimental import pallas as pl
from jax.experimental.pallas import tpu as pltpu


# -----------------------------------------------------------------------------
# Fused Pallas kernel: both GRU layers, full sequence, no grid.
# -----------------------------------------------------------------------------
def _fused_encoder_kernel(x_ref, h0_ref, w1x_ref, wsh_ref, w2h_ref,
                          b1_ref, b2_ref, out_ref, x1_s):
    batch = h0_ref.shape[1]
    hidden = h0_ref.shape[2]
    h4 = 4 * hidden
    n_steps = out_ref.shape[0] // batch

    # ---- Hoisted layer-1 input projection (no sequential dependence). -------
    # One (T*B, D) @ (D, 4H) push with the full layer-1 bias folded in; the
    # n_h column block of w1x is zero so its slot carries only b_hn, which is
    # exactly PyTorch's  n = tanh(x W_in^T + b_in + r * (h W_hn^T + b_hn)).
    x1_s[...] = (
        jnp.dot(x_ref[...].astype(jnp.bfloat16), w1x_ref[...],
                preferred_element_type=jnp.float32)
        + b1_ref[...])

    # Weights / biases are VMEM-resident for the whole kernel; load once.
    wsh = wsh_ref[...]                                   # (H, 8H) bf16: [W1_h | W2_x]
    w2h = w2h_ref[...]                                   # (H, 4H) bf16
    b2 = jnp.broadcast_to(b2_ref[...], (batch, h4))      # hoisted broadcast

    def gru_gates(g, h_prev):
        # Column blocks of g are [r | z | n_x | n_h].
        # TODO(synk): for H not a multiple of 128 these are sub-lane slices;
        # lane-aligned gate packing (pad H to 128 or a single pltpu.roll) would
        # remove per-step relayouts if the kernel is scaled up.
        r = jax.nn.sigmoid(g[:, 0 * hidden:1 * hidden])
        z = jax.nn.sigmoid(g[:, 1 * hidden:2 * hidden])
        n = jnp.tanh(g[:, 2 * hidden:3 * hidden] + r * g[:, 3 * hidden:4 * hidden])
        return (1.0 - z) * n + z * h_prev

    def layer2_step(t, g2x, h2_prev):
        # Split-K: independent MXU pushes summed on the VPU (no lane concat).
        g2 = (g2x
              + jnp.dot(h2_prev.astype(jnp.bfloat16), w2h,
                        preferred_element_type=jnp.float32)
              + b2)
        h2_new = gru_gates(g2, h2_prev)
        # TODO(synk): on v5e, coalescing these (B, H) partial stores into one
        # lane-dense store after the loop relieves the single vst slot.
        out_ref[pl.ds(t * batch, batch), :] = h2_new.astype(out_ref.dtype)
        return h2_new

    # Prologue: layer-1 step 0.  h1_{-1} = 0 so the recurrent dot vanishes.
    h1_0 = gru_gates(x1_s[0:batch, :], jnp.zeros((batch, hidden), jnp.float32))
    h2_init = h0_ref[0].astype(jnp.float32)

    # Skewed steady state: iteration t runs layer-1 step t and layer-2 step
    # t-1.  Both share only h1_{t-1}, so one N=8H matmul feeds both cells and
    # the gate math of one layer overlaps the MXU latency of the other.
    def step(t, carry):
        h1_prev, h2_prev = carry
        gg = jnp.dot(h1_prev.astype(jnp.bfloat16), wsh,
                     preferred_element_type=jnp.float32)      # (B, 8H)
        g1 = x1_s[pl.ds(t * batch, batch), :] + gg[:, :h4]
        h1_t = gru_gates(g1, h1_prev)
        h2_t1 = layer2_step(t - 1, gg[:, h4:], h2_prev)
        return (h1_t, h2_t1)

    # Short fixed trip count: fully unroll so the LLO scheduler can overlap
    # consecutive timesteps.
    # TODO(synk): for large T/B (esp. v7x's 64 MiB VMEM) switch to a T-chunked
    # grid with the carry in scratch, cap the unroll, and set vmem_limit_bytes.
    h1_last, h2_prev = lax.fori_loop(1, n_steps, step, (h1_0, h2_init),
                                     unroll=True)

    # Epilogue: drain layer-2's last step.
    gg = jnp.dot(h1_last.astype(jnp.bfloat16), wsh,
                 preferred_element_type=jnp.float32)
    layer2_step(n_steps - 1, gg[:, h4:], h2_prev)


# -----------------------------------------------------------------------------
# Parameter packing (done ONCE, at parameter-preparation time).
# -----------------------------------------------------------------------------
def _fuse_gru_params(w_ih, w_hh, b_ih, b_hh):
    """PyTorch GRU params -> split x-side / h-side fused matrices.

    Column blocks are [r | z | n_x | n_h] (PyTorch gate order is (r, z, n)):
      W_x: (D, 4H) = [W_ir^T | W_iz^T | W_in^T | 0   ]
      W_h: (H, 4H) = [W_hr^T | W_hz^T | 0      | W_hn^T]
      b  : (1, 4H) = [b_ir+b_hr | b_iz+b_hz | b_in | b_hn]
    b_in / b_hn stay separate because r multiplies only the hidden part of n.
    """
    hidden = w_hh.shape[-1]
    d_in = w_ih.shape[-1]
    w_ir, w_iz, w_in = jnp.split(w_ih, 3, axis=0)
    w_hr, w_hz, w_hn = jnp.split(w_hh, 3, axis=0)

    w_x = jnp.concatenate(
        [w_ir.T, w_iz.T, w_in.T, jnp.zeros((d_in, hidden), w_ih.dtype)], axis=1)
    w_h = jnp.concatenate(
        [w_hr.T, w_hz.T, jnp.zeros((hidden, hidden), w_hh.dtype), w_hn.T], axis=1)
    b = jnp.concatenate([
        b_ih[0:hidden] + b_hh[0:hidden],                    # r
        b_ih[hidden:2 * hidden] + b_hh[hidden:2 * hidden],  # z
        b_ih[2 * hidden:3 * hidden],                        # n (input part)
        b_hh[2 * hidden:3 * hidden],                        # n (hidden part)
    ]).reshape(1, 4 * hidden)
    return w_x, w_h, b


def prepare_encoder_params(params, matmul_dtype=jnp.bfloat16):
    """Pack raw GRU params into the kernel's fused layout (call once)."""
    emb, g = params["embedding"], params["gru"]
    w1x, w1h, b1 = _fuse_gru_params(emb["w_ih"], emb["w_hh"], emb["b_ih"], emb["b_hh"])
    w2x, w2h, b2 = _fuse_gru_params(g["w_ih"], g["w_hh"], g["b_ih"], g["b_hh"])
    return {
        "w1x": w1x.astype(matmul_dtype),                              # (D, 4H)
        "w_shared": jnp.concatenate([w1h, w2x], axis=1).astype(matmul_dtype),  # (H, 8H)
        "w2h": w2h.astype(matmul_dtype),                              # (H, 4H)
        "b1": b1.astype(jnp.float32),                                 # (1, 4H)
        "b2": b2.astype(jnp.float32),                                 # (1, 4H)
    }


def _encoder_pallas(x2d, hidden, packed):
    tb = x2d.shape[0]
    hid = hidden.shape[-1]
    return pl.pallas_call(
        _fused_encoder_kernel,
        out_shape=jax.ShapeDtypeStruct((tb, hid), x2d.dtype),
        in_specs=[pl.BlockSpec(memory_space=pltpu.MemorySpace.VMEM)] * 7,
        out_specs=pl.BlockSpec(memory_space=pltpu.MemorySpace.VMEM),
        scratch_shapes=[
            pltpu.VMEM((tb, 4 * hid), jnp.float32),   # hoisted layer-1 x-projection
        ],
    )(x2d, hidden, packed["w1x"], packed["w_shared"], packed["w2h"],
      packed["b1"], packed["b2"])


# -----------------------------------------------------------------------------
# EncoderRNN params + forward.
# -----------------------------------------------------------------------------
def init_gru_params(key, input_size, hidden_size):
    """PyTorch default init: U(-1/sqrt(H), 1/sqrt(H)) for all GRU params."""
    bound = 1.0 / jnp.sqrt(jnp.float32(hidden_size))
    k1, k2, k3, k4 = jax.random.split(key, 4)
    return {
        "w_ih": jax.random.uniform(k1, (3 * hidden_size, input_size),
                                   jnp.float32, -bound, bound),
        "w_hh": jax.random.uniform(k2, (3 * hidden_size, hidden_size),
                                   jnp.float32, -bound, bound),
        "b_ih": jax.random.uniform(k3, (3 * hidden_size,),
                                   jnp.float32, -bound, bound),
        "b_hh": jax.random.uniform(k4, (3 * hidden_size,),
                                   jnp.float32, -bound, bound),
    }


def init_encoder_params(key, input_size, hidden_size):
    k_emb, k_gru = jax.random.split(key)
    return {
        "embedding": init_gru_params(k_emb, input_size, hidden_size),
        "gru": init_gru_params(k_gru, hidden_size, hidden_size),
    }


@functools.partial(jax.jit, static_argnames=("total_length",))
def encoder_rnn_forward(packed_params, inp, hidden, total_length=None):
    """Matches EncoderRNN.forward(input, hidden, total_length).

    inp:    (T, B, input_size)   time-major, like nn.GRU default
    hidden: (1, B, hidden_size)  initial hidden for the *second* GRU
    total_length is unused by the reference forward (kept for signature parity).
    """
    del total_length
    seq_len, batch, d_in = inp.shape
    hid = hidden.shape[-1]
    x2d = inp.reshape(seq_len * batch, d_in)          # free XLA reshape in HBM
    out2d = _encoder_pallas(x2d, hidden, packed_params)
    out = out2d.reshape(seq_len, batch, hid)
    # h_n of the second GRU == its last output row (exact for f32 inputs; would
    # downcast if the input dtype were narrower than f32).
    h_n = out[seq_len - 1:seq_len]
    return out, h_n


if __name__ == "__main__":
    # Small shapes consistent with the module: seq=8, batch=2, input=16, hidden=32.
    # TODO(synk): for large B on v7x, split the batch across the two TensorCores
    # (core_map / parallel leading axis); at B=2 a single core is the right call.
    T, B, INPUT_SIZE, HIDDEN_SIZE = 8, 2, 16, 32

    key = jax.random.PRNGKey(0)
    k_params, k_x, k_h = jax.random.split(key, 3)

    params = init_encoder_params(k_params, INPUT_SIZE, HIDDEN_SIZE)
    packed = prepare_encoder_params(params)           # weight packing: once
    x = jax.random.normal(k_x, (T, B, INPUT_SIZE), dtype=jnp.float32)
    hidden = jax.random.normal(k_h, (1, B, HIDDEN_SIZE), dtype=jnp.float32)

    output, h_n = encoder_rnn_forward(packed, x, hidden, total_length=T)
    jax.block_until_ready((output, h_n))

    assert output.shape == (T, B, HIDDEN_SIZE)
    assert h_n.shape == (1, B, HIDDEN_SIZE)
    assert bool(jnp.all(jnp.isfinite(output))) and bool(jnp.all(jnp.isfinite(h_n)))
    print("KERNEL_OK")
</pallas_src>

<mosaic_0001>
module attributes {stable_mosaic.version = 11 : i64} {
  func.func @_fused_encoder_kernel(%arg0: memref<16x16xf32, #tpu.memory_space<vmem>>, %arg1: memref<1x2x32xf32, #tpu.memory_space<vmem>>, %arg2: memref<16x128xbf16, #tpu.memory_space<vmem>>, %arg3: memref<32x256xbf16, #tpu.memory_space<vmem>>, %arg4: memref<32x128xbf16, #tpu.memory_space<vmem>>, %arg5: memref<1x128xf32, #tpu.memory_space<vmem>>, %arg6: memref<1x128xf32, #tpu.memory_space<vmem>>, %arg7: memref<16x32xf32, #tpu.memory_space<vmem>>, %arg8: memref<16x128xf32, #tpu.memory_space<vmem>>) attributes {dimension_semantics = [], scalar_prefetch = 0 : i64, scratch_operands = 1 : i64, tpu.core_type = #tpu.core_type<tc>} {
    %c0 = arith.constant 0 : index
    %c0_0 = arith.constant 0 : index
    %0 = vector.load %arg0[%c0, %c0_0] : memref<16x16xf32, #tpu.memory_space<vmem>>, vector<16x16xf32>
    %1 = arith.truncf %0 : vector<16x16xf32> to vector<16x16xbf16>
    %c0_1 = arith.constant 0 : index
    %c0_2 = arith.constant 0 : index
    %2 = vector.load %arg2[%c0_1, %c0_2] : memref<16x128xbf16, #tpu.memory_space<vmem>>, vector<16x128xbf16>
    %cst = arith.constant dense<0.000000e+00> : vector<16x128xf32>
    %3 = tpu.matmul %1, %2, %cst {dimension_numbers = #tpu.dot_dimension_numbers<[1], [0], [0], [1], [0, 0, 1, 1], [], []>} : vector<16x16xbf16>, vector<16x128xbf16>, vector<16x128xf32> -> vector<16x128xf32>
    %c0_3 = arith.constant 0 : index
    %c0_4 = arith.constant 0 : index
    %4 = vector.load %arg5[%c0_3, %c0_4] : memref<1x128xf32, #tpu.memory_space<vmem>>, vector<1x128xf32>
    %5 = vector.broadcast %4 : vector<1x128xf32> to vector<16x128xf32>
    %6 = arith.addf %3, %5 : vector<16x128xf32>
    %c0_5 = arith.constant 0 : index
    %c0_6 = arith.constant 0 : index
    %7 = vector.load %arg8[%c0_5, %c0_6] : memref<16x128xf32, #tpu.memory_space<vmem>>, vector<16x128xf32>
    tpu.vector_store %arg8[%c0_5, %c0_6], %6 {strides = array<i32>} : memref<16x128xf32, #tpu.memory_space<vmem>>, vector<16x128xf32>,
    %c0_7 = arith.constant 0 : index
    %c0_8 = arith.constant 0 : index
    %8 = vector.load %arg3[%c0_7, %c0_8] : memref<32x256xbf16, #tpu.memory_space<vmem>>, vector<32x256xbf16>
    %c0_9 = arith.constant 0 : index
    %c0_10 = arith.constant 0 : index
    %9 = vector.load %arg4[%c0_9, %c0_10] : memref<32x128xbf16, #tpu.memory_space<vmem>>, vector<32x128xbf16>
    %c0_11 = arith.constant 0 : index
    %c0_12 = arith.constant 0 : index
    %10 = vector.load %arg6[%c0_11, %c0_12] : memref<1x128xf32, #tpu.memory_space<vmem>>, vector<1x128xf32>
    %11 = vector.shape_cast %10 : vector<1x128xf32> to vector<1x128xf32>
    %12 = vector.broadcast %11 : vector<1x128xf32> to vector<2x128xf32>
    %c0_13 = arith.constant 0 : index
    %c0_14 = arith.constant 0 : index
    %13 = vector.load %arg8[%c0_13, %c0_14] : memref<16x128xf32, #tpu.memory_space<vmem>>, vector<2x128xf32>
    %cst_15 = arith.constant 0.000000e+00 : f32
    %14 = vector.broadcast %cst_15 : f32 to vector<2x32xf32>
    %15 = vector.extract_strided_slice %13 {offsets = [0, 0], sizes = [2, 32], strides = [1, 1]} : vector<2x128xf32> to vector<2x32xf32>
    %16 = arith.negf %15 : vector<2x32xf32>
    %17 = math.exp %16 : vector<2x32xf32>
    %cst_16 = arith.constant 1.000000e+00 : f32
    %18 = vector.broadcast %cst_16 : f32 to vector<2x32xf32>
    %19 = arith.addf %18, %17 : vector<2x32xf32>
    %20 = arith.divf %18, %19 : vector<2x32xf32>
    %21 = vector.extract_strided_slice %13 {offsets = [0, 32], sizes = [2, 32], strides = [1, 1]} : vector<2x128xf32> to vector<2x32xf32>
    %22 = arith.negf %21 : vector<2x32xf32>
    %23 = math.exp %22 : vector<2x32xf32>
    %cst_17 = arith.constant 1.000000e+00 : f32
    %24 = vector.broadcast %cst_17 : f32 to vector<2x32xf32>
    %25 = arith.addf %24, %23 : vector<2x32xf32>
    %26 = arith.divf %24, %25 : vector<2x32xf32>
    %27 = vector.extract_strided_slice %13 {offsets = [0, 64], sizes = [2, 32], strides = [1, 1]} : vector<2x128xf32> to vector<2x32xf32>
    %28 = vector.extract_strided_slice %13 {offsets = [0, 96], sizes = [2, 32], strides = [1, 1]} : vector<2x128xf32> to vector<2x32xf32>
    %29 = arith.mulf %20, %28 : vector<2x32xf32>
    %30 = arith.addf %27, %29 : vector<2x32xf32>
    %31 = math.tanh %30 : vector<2x32xf32>
    %cst_18 = arith.constant 1.000000e+00 : f32
    %32 = vector.broadcast %cst_18 : f32 to vector<2x32xf32>
    %33 = arith.subf %32, %26 : vector<2x32xf32>
    %34 = arith.mulf %33, %31 : vector<2x32xf32>
    %35 = arith.mulf %26, %14 : vector<2x32xf32>
    %36 = arith.addf %34, %35 : vector<2x32xf32>
    %c0_19 = arith.constant 0 : index
    %c0_20 = arith.constant 0 : index
    %c0_21 = arith.constant 0 : index
    %37 = vector.load %arg1[%c0_19, %c0_20, %c0_21] : memref<1x2x32xf32, #tpu.memory_space<vmem>>, vector<1x2x32xf32>
    %38 = vector.shape_cast %37 : vector<1x2x32xf32> to vector<2x32xf32>
    %c1_i32 = arith.constant 1 : i32
    %39 = arith.truncf %36 : vector<2x32xf32> to vector<2x32xbf16>
    %cst_22 = arith.constant dense<0.000000e+00> : vector<2x256xf32>
    %40 = tpu.matmul %39, %8, %cst_22 {dimension_numbers = #tpu.dot_dimension_numbers<[1], [0], [0], [1], [0, 0, 1, 1], [], []>} : vector<2x32xbf16>, vector<32x256xbf16>, vector<2x256xf32> -> vector<2x256xf32>
    %c2_i32 = arith.constant 2 : i32
    %41 = arith.muli %c1_i32, %c2_i32 : i32
    %42 = arith.index_cast %41 : i32 to index
    %c0_23 = arith.constant 0 : index
    %43 = vector.load %arg8[%42, %c0_23] : memref<16x128xf32, #tpu.memory_space<vmem>>, vector<2x128xf32>
    %44 = vector.extract_strided_slice %40 {offsets = [0, 0], sizes = [2, 128], strides = [1, 1]} : vector<2x256xf32> to vector<2x128xf32>
    %45 = arith.addf %43, %44 : vector<2x128xf32>
    %46 = vector.extract_strided_slice %45 {offsets = [0, 0], sizes = [2, 32], strides = [1, 1]} : vector<2x128xf32> to vector<2x32xf32>
    %47 = arith.negf %46 : vector<2x32xf32>
    %48 = math.exp %47 : vector<2x32xf32>
    %cst_24 = arith.constant 1.000000e+00 : f32
    %49 = vector.broadcast %cst_24 : f32 to vector<2x32xf32>
    %50 = arith.addf %49, %48 : vector<2x32xf32>
    %51 = arith.divf %49, %50 : vector<2x32xf32>
    %52 = vector.extract_strided_slice %45 {offsets = [0, 32], sizes = [2, 32], strides = [1, 1]} : vector<2x128xf32> to vector<2x32xf32>
    %53 = arith.negf %52 : vector<2x32xf32>
    %54 = math.exp %53 : vector<2x32xf32>
    %cst_25 = arith.constant 1.000000e+00 : f32
    %55 = vector.broadcast %cst_25 : f32 to vector<2x32xf32>
    %56 = arith.addf %55, %54 : vector<2x32xf32>
    %57 = arith.divf %55, %56 : vector<2x32xf32>
    %58 = vector.extract_strided_slice %45 {offsets = [0, 64], sizes = [2, 32], strides = [1, 1]} : vector<2x128xf32> to vector<2x32xf32>
    %59 = vector.extract_strided_slice %45 {offsets = [0, 96], sizes = [2, 32], strides = [1, 1]} : vector<2x128xf32> to vector<2x32xf32>
    %60 = arith.mulf %51, %59 : vector<2x32xf32>
    %61 = arith.addf %58, %60 : vector<2x32xf32>
    %62 = math.tanh %61 : vector<2x32xf32>
    %cst_26 = arith.constant 1.000000e+00 : f32
    %63 = vector.broadcast %cst_26 : f32 to vector<2x32xf32>
    %64 = arith.subf %63, %57 : vector<2x32xf32>
    %65 = arith.mulf %64, %62 : vector<2x32xf32>
    %66 = arith.mulf %57, %36 : vector<2x32xf32>
    %67 = arith.addf %65, %66 : vector<2x32xf32>
    %c1_i32_27 = arith.constant 1 : i32
    %68 = arith.subi %c1_i32, %c1_i32_27 : i32
    %69 = vector.extract_strided_slice %40 {offsets = [0, 128], sizes = [2, 128], strides = [1, 1]} : vector<2x256xf32> to vector<2x128xf32>
    %70 = arith.truncf %38 : vector<2x32xf32> to vector<2x32xbf16>
    %cst_28 = arith.constant dense<0.000000e+00> : vector<2x128xf32>
    %71 = tpu.matmul %70, %9, %cst_28 {dimension_numbers = #tpu.dot_dimension_numbers<[1], [0], [0], [1], [0, 0, 1, 1], [], []>} : vector<2x32xbf16>, vector<32x128xbf16>, vector<2x128xf32> -> vector<2x128xf32>
    %72 = arith.addf %69, %71 : vector<2x128xf32>
    %73 = arith.addf %72, %12 : vector<2x128xf32>
    %74 = vector.extract_strided_slice %73 {offsets = [0, 0], sizes = [2, 32], strides = [1, 1]} : vector<2x128xf32> to vector<2x32xf32>
    %75 = arith.negf %74 : vector<2x32xf32>
    %76 = math.exp %75 : vector<2x32xf32>
    %cst_29 = arith.constant 1.000000e+00 : f32
    %77 = vector.broadcast %cst_29 : f32 to vector<2x32xf32>
    %78 = arith.addf %77, %76 : vector<2x32xf32>
    %79 = arith.divf %77, %78 : vector<2x32xf32>
    %80 = vector.extract_strided_slice %73 {offsets = [0, 32], sizes = [2, 32], strides = [1, 1]} : vector<2x128xf32> to vector<2x32xf32>
    %81 = arith.negf %80 : vector<2x32xf32>
    %82 = math.exp %81 : vector<2x32xf32>
    %cst_30 = arith.constant 1.000000e+00 : f32
    %83 = vector.broadcast %cst_30 : f32 to vector<2x32xf32>
    %84 = arith.addf %83, %82 : vector<2x32xf32>
    %85 = arith.divf %83, %84 : vector<2x32xf32>
    %86 = vector.extract_strided_slice %73 {offsets = [0, 64], sizes = [2, 32], strides = [1, 1]} : vector<2x128xf32> to vector<2x32xf32>
    %87 = vector.extract_strided_slice %73 {offsets = [0, 96], sizes = [2, 32], strides = [1, 1]} : vector<2x128xf32> to vector<2x32xf32>
    %88 = arith.mulf %79, %87 : vector<2x32xf32>
    %89 = arith.addf %86, %88 : vector<2x32xf32>
    %90 = math.tanh %89 : vector<2x32xf32>
    %cst_31 = arith.constant 1.000000e+00 : f32
    %91 = vector.broadcast %cst_31 : f32 to vector<2x32xf32>
    %92 = arith.subf %91, %85 : vector<2x32xf32>
    %93 = arith.mulf %92, %90 : vector<2x32xf32>
    %94 = arith.mulf %85, %38 : vector<2x32xf32>
    %95 = arith.addf %93, %94 : vector<2x32xf32>
    %c2_i32_32 = arith.constant 2 : i32
    %96 = arith.muli %68, %c2_i32_32 : i32
    %97 = arith.index_cast %96 : i32 to index
    %c0_33 = arith.constant 0 : index
    %98 = vector.load %arg7[%97, %c0_33] : memref<16x32xf32, #tpu.memory_space<vmem>>, vector<2x32xf32>
    tpu.vector_store %arg7[%97, %c0_33], %95 {strides = array<i32>} : memref<16x32xf32, #tpu.memory_space<vmem>>, vector<2x32xf32>,
    %c2_i32_34 = arith.constant 2 : i32
    %99 = arith.truncf %67 : vector<2x32xf32> to vector<2x32xbf16>
    %cst_35 = arith.constant dense<0.000000e+00> : vector<2x256xf32>
    %100 = tpu.matmul %99, %8, %cst_35 {dimension_numbers = #tpu.dot_dimension_numbers<[1], [0], [0], [1], [0, 0, 1, 1], [], []>} : vector<2x32xbf16>, vector<32x256xbf16>, vector<2x256xf32> -> vector<2x256xf32>
    %c2_i32_36 = arith.constant 2 : i32
    %101 = arith.muli %c2_i32_34, %c2_i32_36 : i32
    %102 = arith.index_cast %101 : i32 to index
    %c0_37 = arith.constant 0 : index
    %103 = vector.load %arg8[%102, %c0_37] : memref<16x128xf32, #tpu.memory_space<vmem>>, vector<2x128xf32>
    %104 = vector.extract_strided_slice %100 {offsets = [0, 0], sizes = [2, 128], strides = [1, 1]} : vector<2x256xf32> to vector<2x128xf32>
    %105 = arith.addf %103, %104 : vector<2x128xf32>
    %106 = vector.extract_strided_slice %105 {offsets = [0, 0], sizes = [2, 32], strides = [1, 1]} : vector<2x128xf32> to vector<2x32xf32>
    %107 = arith.negf %106 : vector<2x32xf32>
    %108 = math.exp %107 : vector<2x32xf32>
    %cst_38 = arith.constant 1.000000e+00 : f32
    %109 = vector.broadcast %cst_38 : f32 to vector<2x32xf32>
    %110 = arith.addf %109, %108 : vector<2x32xf32>
    %111 = arith.divf %109, %110 : vector<2x32xf32>
    %112 = vector.extract_strided_slice %105 {offsets = [0, 32], sizes = [2, 32], strides = [1, 1]} : vector<2x128xf32> to vector<2x32xf32>
    %113 = arith.negf %112 : vector<2x32xf32>
    %114 = math.exp %113 : vector<2x32xf32>
    %cst_39 = arith.constant 1.000000e+00 : f32
    %115 = vector.broadcast %cst_39 : f32 to vector<2x32xf32>
    %116 = arith.addf %115, %114 : vector<2x32xf32>
    %117 = arith.divf %115, %116 : vector<2x32xf32>
    %118 = vector.extract_strided_slice %105 {offsets = [0, 64], sizes = [2, 32], strides = [1, 1]} : vector<2x128xf32> to vector<2x32xf32>
    %119 = vector.extract_strided_slice %105 {offsets = [0, 96], sizes = [2, 32], strides = [1, 1]} : vector<2x128xf32> to vector<2x32xf32>
    %120 = arith.mulf %111, %119 : vector<2x32xf32>
    %121 = arith.addf %118, %120 : vector<2x32xf32>
    %122 = math.tanh %121 : vector<2x32xf32>
    %cst_40 = arith.constant 1.000000e+00 : f32
    %123 = vector.broadcast %cst_40 : f32 to vector<2x32xf32>
    %124 = arith.subf %123, %117 : vector<2x32xf32>
    %125 = arith.mulf %124, %122 : vector<2x32xf32>
    %126 = arith.mulf %117, %67 : vector<2x32xf32>
    %127 = arith.addf %125, %126 : vector<2x32xf32>
    %c1_i32_41 = arith.constant 1 : i32
    %128 = arith.subi %c2_i32_34, %c1_i32_41 : i32
    %129 = vector.extract_strided_slice %100 {offsets = [0, 128], sizes = [2, 128], strides = [1, 1]} : vector<2x256xf32> to vector<2x128xf32>
    %130 = arith.truncf %95 : vector<2x32xf32> to vector<2x32xbf16>
    %cst_42 = arith.constant dense<0.000000e+00> : vector<2x128xf32>
    %131 = tpu.matmul %130, %9, %cst_42 {dimension_numbers = #tpu.dot_dimension_numbers<[1], [0], [0], [1], [0, 0, 1, 1], [], []>} : vector<2x32xbf16>, vector<32x128xbf16>, vector<2x128xf32> -> vector<2x128xf32>
    %132 = arith.addf %129, %131 : vector<2x128xf32>
    %133 = arith.addf %132, %12 : vector<2x128xf32>
    %134 = vector.extract_strided_slice %133 {offsets = [0, 0], sizes = [2, 32], strides = [1, 1]} : vector<2x128xf32> to vector<2x32xf32>
    %135 = arith.negf %134 : vector<2x32xf32>
    %136 = math.exp %135 : vector<2x32xf32>
    %cst_43 = arith.constant 1.000000e+00 : f32
    %137 = vector.broadcast %cst_43 : f32 to vector<2x32xf32>
    %138 = arith.addf %137, %136 : vector<2x32xf32>
    %139 = arith.divf %137, %138 : vector<2x32xf32>
    %140 = vector.extract_strided_slice %133 {offsets = [0, 32], sizes = [2, 32], strides = [1, 1]} : vector<2x128xf32> to vector<2x32xf32>
    %141 = arith.negf %140 : vector<2x32xf32>
    %142 = math.exp %141 : vector<2x32xf32>
    %cst_44 = arith.constant 1.000000e+00 : f32
    %143 = vector.broadcast %cst_44 : f32 to vector<2x32xf32>
    %144 = arith.addf %143, %142 : vector<2x32xf32>
    %145 = arith.divf %143, %144 : vector<2x32xf32>
    %146 = vector.extract_strided_slice %133 {offsets = [0, 64], sizes = [2, 32], strides = [1, 1]} : vector<2x128xf32> to vector<2x32xf32>
    %147 = vector.extract_strided_slice %133 {offsets = [0, 96], sizes = [2, 32], strides = [1, 1]} : vector<2x128xf32> to vector<2x32xf32>
    %148 = arith.mulf %139, %147 : vector<2x32xf32>
    %149 = arith.addf %146, %148 : vector<2x32xf32>
    %150 = math.tanh %149 : vector<2x32xf32>
    %cst_45 = arith.constant 1.000000e+00 : f32
    %151 = vector.broadcast %cst_45 : f32 to vector<2x32xf32>
    %152 = arith.subf %151, %145 : vector<2x32xf32>
    %153 = arith.mulf %152, %150 : vector<2x32xf32>
    %154 = arith.mulf %145, %95 : vector<2x32xf32>
    %155 = arith.addf %153, %154 : vector<2x32xf32>
    %c2_i32_46 = arith.constant 2 : i32
    %156 = arith.muli %128, %c2_i32_46 : i32
    %157 = arith.index_cast %156 : i32 to index
    %c0_47 = arith.constant 0 : index
    %158 = vector.load %arg7[%157, %c0_47] : memref<16x32xf32, #tpu.memory_space<vmem>>, vector<2x32xf32>
    tpu.vector_store %arg7[%157, %c0_47], %155 {strides = array<i32>} : memref<16x32xf32, #tpu.memory_space<vmem>>, vector<2x32xf32>,
    %c3_i32 = arith.constant 3 : i32
    %159 = arith.truncf %127 : vector<2x32xf32> to vector<2x32xbf16>
    %cst_48 = arith.constant dense<0.000000e+00> : vector<2x256xf32>
    %160 = tpu.matmul %159, %8, %cst_48 {dimension_numbers = #tpu.dot_dimension_numbers<[1], [0], [0], [1], [0, 0, 1, 1], [], []>} : vector<2x32xbf16>, vector<32x256xbf16>, vector<2x256xf32> -> vector<2x256xf32>
    %c2_i32_49 = arith.constant 2 : i32
    %161 = arith.muli %c3_i32, %c2_i32_49 : i32
    %162 = arith.index_cast %161 : i32 to index
    %c0_50 = arith.constant 0 : index
    %163 = vector.load %arg8[%162, %c0_50] : memref<16x128xf32, #tpu.memory_space<vmem>>, vector<2x128xf32>
    %164 = vector.extract_strided_slice %160 {offsets = [0, 0], sizes = [2, 128], strides = [1, 1]} : vector<2x256xf32> to vector<2x128xf32>
    %165 = arith.addf %163, %164 : vector<2x128xf32>
    %166 = vector.extract_strided_slice %165 {offsets = [0, 0], sizes = [2, 32], strides = [1, 1]} : vector<2x128xf32> to vector<2x32xf32>
    %167 = arith.negf %166 : vector<2x32xf32>
    %168 = math.exp %167 : vector<2x32xf32>
    %cst_51 = arith.constant 1.000000e+00 : f32
    %169 = vector.broadcast %cst_51 : f32 to vector<2x32xf32>
    %170 = arith.addf %169, %168 : vector<2x32xf32>
    %171 = arith.divf %169, %170 : vector<2x32xf32>
    %172 = vector.extract_strided_slice %165 {offsets = [0, 32], sizes = [2, 32], strides = [1, 1]} : vector<2x128xf32> to vector<2x32xf32>
    %173 = arith.negf %172 : vector<2x32xf32>
    %174 = math.exp %173 : vector<2x32xf32>
    %cst_52 = arith.constant 1.000000e+00 : f32
    %175 = vector.broadcast %cst_52 : f32 to vector<2x32xf32>
    %176 = arith.addf %175, %174 : vector<2x32xf32>
    %177 = arith.divf %175, %176 : vector<2x32xf32>
    %178 = vector.extract_strided_slice %165 {offsets = [0, 64], sizes = [2, 32], strides = [1, 1]} : vector<2x128xf32> to vector<2x32xf32>
    %179 = vector.extract_strided_slice %165 {offsets = [0, 96], sizes = [2, 32], strides = [1, 1]} : vector<2x128xf32> to vector<2x32xf32>
    %180 = arith.mulf %171, %179 : vector<2x32xf32>
    %181 = arith.addf %178, %180 : vector<2x32xf32>
    %182 = math.tanh %181 : vector<2x32xf32>
    %cst_53 = arith.constant 1.000000e+00 : f32
    %183 = vector.broadcast %cst_53 : f32 to vector<2x32xf32>
    %184 = arith.subf %183, %177 : vector<2x32xf32>
    %185 = arith.mulf %184, %182 : vector<2x32xf32>
    %186 = arith.mulf %177, %127 : vector<2x32xf32>
    %187 = arith.addf %185, %186 : vector<2x32xf32>
    %c1_i32_54 = arith.constant 1 : i32
    %188 = arith.subi %c3_i32, %c1_i32_54 : i32
    %189 = vector.extract_strided_slice %160 {offsets = [0, 128], sizes = [2, 128], strides = [1, 1]} : vector<2x256xf32> to vector<2x128xf32>
    %190 = arith.truncf %155 : vector<2x32xf32> to vector<2x32xbf16>
    %cst_55 = arith.constant dense<0.000000e+00> : vector<2x128xf32>
    %191 = tpu.matmul %190, %9, %cst_55 {dimension_numbers = #tpu.dot_dimension_numbers<[1], [0], [0], [1], [0, 0, 1, 1], [], []>} : vector<2x32xbf16>, vector<32x128xbf16>, vector<2x128xf32> -> vector<2x128xf32>
    %192 = arith.addf %189, %191 : vector<2x128xf32>
    %193 = arith.addf %192, %12 : vector<2x128xf32>
    %194 = vector.extract_strided_slice %193 {offsets = [0, 0], sizes = [2, 32], strides = [1, 1]} : vector<2x128xf32> to vector<2x32xf32>
    %195 = arith.negf %194 : vector<2x32xf32>
    %196 = math.exp %195 : vector<2x32xf32>
    %cst_56 = arith.constant 1.000000e+00 : f32
    %197 = vector.broadcast %cst_56 : f32 to vector<2x32xf32>
    %198 = arith.addf %197, %196 : vector<2x32xf32>
    %199 = arith.divf %197, %198 : vector<2x32xf32>
    %200 = vector.extract_strided_slice %193 {offsets = [0, 32], sizes = [2, 32], strides = [1, 1]} : vector<2x128xf32> to vector<2x32xf32>
    %201 = arith.negf %200 : vector<2x32xf32>
    %202 = math.exp %201 : vector<2x32xf32>
    %cst_57 = arith.constant 1.000000e+00 : f32
    %203 = vector.broadcast %cst_57 : f32 to vector<2x32xf32>
    %204 = arith.addf %203, %202 : vector<2x32xf32>
    %205 = arith.divf %203, %204 : vector<2x32xf32>
    %206 = vector.extract_strided_slice %193 {offsets = [0, 64], sizes = [2, 32], strides = [1, 1]} : vector<2x128xf32> to vector<2x32xf32>
    %207 = vector.extract_strided_slice %193 {offsets = [0, 96], sizes = [2, 32], strides = [1, 1]} : vector<2x128xf32> to vector<2x32xf32>
    %208 = arith.mulf %199, %207 : vector<2x32xf32>
    %209 = arith.addf %206, %208 : vector<2x32xf32>
    %210 = math.tanh %209 : vector<2x32xf32>
    %cst_58 = arith.constant 1.000000e+00 : f32
    %211 = vector.broadcast %cst_58 : f32 to vector<2x32xf32>
    %212 = arith.subf %211, %205 : vector<2x32xf32>
    %213 = arith.mulf %212, %210 : vector<2x32xf32>
    %214 = arith.mulf %205, %155 : vector<2x32xf32>
    %215 = arith.addf %213, %214 : vector<2x32xf32>
    %c2_i32_59 = arith.constant 2 : i32
    %216 = arith.muli %188, %c2_i32_59 : i32
    %217 = arith.index_cast %216 : i32 to index
    %c0_60 = arith.constant 0 : index
    %218 = vector.load %arg7[%217, %c0_60] : memref<16x32xf32, #tpu.memory_space<vmem>>, vector<2x32xf32>
    tpu.vector_store %arg7[%217, %c0_60], %215 {strides = array<i32>} : memref<16x32xf32, #tpu.memory_space<vmem>>, vector<2x32xf32>,
    %c4_i32 = arith.constant 4 : i32
    %219 = arith.truncf %187 : vector<2x32xf32> to vector<2x32xbf16>
    %cst_61 = arith.constant dense<0.000000e+00> : vector<2x256xf32>
    %220 = tpu.matmul %219, %8, %cst_61 {dimension_numbers = #tpu.dot_dimension_numbers<[1], [0], [0], [1], [0, 0, 1, 1], [], []>} : vector<2x32xbf16>, vector<32x256xbf16>, vector<2x256xf32> -> vector<2x256xf32>
    %c2_i32_62 = arith.constant 2 : i32
    %221 = arith.muli %c4_i32, %c2_i32_62 : i32
    %222 = arith.index_cast %221 : i32 to index
    %c0_63 = arith.constant 0 : index
    %223 = vector.load %arg8[%222, %c0_63] : memref<16x128xf32, #tpu.memory_space<vmem>>, vector<2x128xf32>
    %224 = vector.extract_strided_slice %220 {offsets = [0, 0], sizes = [2, 128], strides = [1, 1]} : vector<2x256xf32> to vector<2x128xf32>
    %225 = arith.addf %223, %224 : vector<2x128xf32>
    %226 = vector.extract_strided_slice %225 {offsets = [0, 0], sizes = [2, 32], strides = [1, 1]} : vector<2x128xf32> to vector<2x32xf32>
    %227 = arith.negf %226 : vector<2x32xf32>
    %228 = math.exp %227 : vector<2x32xf32>
    %cst_64 = arith.constant 1.000000e+00 : f32
    %229 = vector.broadcast %cst_64 : f32 to vector<2x32xf32>
    %230 = arith.addf %229, %228 : vector<2x32xf32>
    %231 = arith.divf %229, %230 : vector<2x32xf32>
    %232 = vector.extract_strided_slice %225 {offsets = [0, 32], sizes = [2, 32], strides = [1, 1]} : vector<2x128xf32> to vector<2x32xf32>
    %233 = arith.negf %232 : vector<2x32xf32>
    %234 = math.exp %233 : vector<2x32xf32>
    %cst_65 = arith.constant 1.000000e+00 : f32
    %235 = vector.broadcast %cst_65 : f32 to vector<2x32xf32>
    %236 = arith.addf %235, %234 : vector<2x32xf32>
    %237 = arith.divf %235, %236 : vector<2x32xf32>
    %238 = vector.extract_strided_slice %225 {offsets = [0, 64], sizes = [2, 32], strides = [1, 1]} : vector<2x128xf32> to vector<2x32xf32>
    %239 = vector.extract_strided_slice %225 {offsets = [0, 96], sizes = [2, 32], strides = [1, 1]} : vector<2x128xf32> to vector<2x32xf32>
    %240 = arith.mulf %231, %239 : vector<2x32xf32>
    %241 = arith.addf %238, %240 : vector<2x32xf32>
    %242 = math.tanh %241 : vector<2x32xf32>
    %cst_66 = arith.constant 1.000000e+00 : f32
    %243 = vector.broadcast %cst_66 : f32 to vector<2x32xf32>
    %244 = arith.subf %243, %237 : vector<2x32xf32>
    %245 = arith.mulf %244, %242 : vector<2x32xf32>
    %246 = arith.mulf %237, %187 : vector<2x32xf32>
    %247 = arith.addf %245, %246 : vector<2x32xf32>
    %c1_i32_67 = arith.constant 1 : i32
    %248 = arith.subi %c4_i32, %c1_i32_67 : i32
    %249 = vector.extract_strided_slice %220 {offsets = [0, 128], sizes = [2, 128], strides = [1, 1]} : vector<2x256xf32> to vector<2x128xf32>
    %250 = arith.truncf %215 : vector<2x32xf32> to vector<2x32xbf16>
    %cst_68 = arith.constant dense<0.000000e+00> : vector<2x128xf32>
    %251 = tpu.matmul %250, %9, %cst_68 {dimension_numbers = #tpu.dot_dimension_numbers<[1], [0], [0], [1], [0, 0, 1, 1], [], []>} : vector<2x32xbf16>, vector<32x128xbf16>, vector<2x128xf32> -> vector<2x128xf32>
    %252 = arith.addf %249, %251 : vector<2x128xf32>
    %253 = arith.addf %252, %12 : vector<2x128xf32>
    %254 = vector.extract_strided_slice %253 {offsets = [0, 0], sizes = [2, 32], strides = [1, 1]} : vector<2x128xf32> to vector<2x32xf32>
    %255 = arith.negf %254 : vector<2x32xf32>
    %256 = math.exp %255 : vector<2x32xf32>
    %cst_69 = arith.constant 1.000000e+00 : f32
    %257 = vector.broadcast %cst_69 : f32 to vector<2x32xf32>
    %258 = arith.addf %257, %256 : vector<2x32xf32>
    %259 = arith.divf %257, %258 : vector<2x32xf32>
    %260 = vector.extract_strided_slice %253 {offsets = [0, 32], sizes = [2, 32], strides = [1, 1]} : vector<2x128xf32> to vector<2x32xf32>
    %261 = arith.negf %260 : vector<2x32xf32>
    %262 = math.exp %261 : vector<2x32xf32>
    %cst_70 = arith.constant 1.000000e+00 : f32
    %263 = vector.broadcast %cst_70 : f32 to vector<2x32xf32>
    %264 = arith.addf %263, %262 : vector<2x32xf32>
    %265 = arith.divf %263, %264 : vector<2x32xf32>
    %266 = vector.extract_strided_slice %253 {offsets = [0, 64], sizes = [2, 32], strides = [1, 1]} : vector<2x128xf32> to vector<2x32xf32>
    %267 = vector.extract_strided_slice %253 {offsets = [0, 96], sizes = [2, 32], strides = [1, 1]} : vector<2x128xf32> to vector<2x32xf32>
    %268 = arith.mulf %259, %267 : vector<2x32xf32>
    %269 = arith.addf %266, %268 : vector<2x32xf32>
    %270 = math.tanh %269 : vector<2x32xf32>
    %cst_71 = arith.constant 1.000000e+00 : f32
    %271 = vector.broadcast %cst_71 : f32 to vector<2x32xf32>
    %272 = arith.subf %271, %265 : vector<2x32xf32>
    %273 = arith.mulf %272, %270 : vector<2x32xf32>
    %274 = arith.mulf %265, %215 : vector<2x32xf32>
    %275 = arith.addf %273, %274 : vector<2x32xf32>
    %c2_i32_72 = arith.constant 2 : i32
    %276 = arith.muli %248, %c2_i32_72 : i32
    %277 = arith.index_cast %276 : i32 to index
    %c0_73 = arith.constant 0 : index
    %278 = vector.load %arg7[%277, %c0_73] : memref<16x32xf32, #tpu.memory_space<vmem>>, vector<2x32xf32>
    tpu.vector_store %arg7[%277, %c0_73], %275 {strides = array<i32>} : memref<16x32xf32, #tpu.memory_space<vmem>>, vector<2x32xf32>,
    %c5_i32 = arith.constant 5 : i32
    %279 = arith.truncf %247 : vector<2x32xf32> to vector<2x32xbf16>
    %cst_74 = arith.constant dense<0.000000e+00> : vector<2x256xf32>
    %280 = tpu.matmul %279, %8, %cst_74 {dimension_numbers = #tpu.dot_dimension_numbers<[1], [0], [0], [1], [0, 0, 1, 1], [], []>} : vector<2x32xbf16>, vector<32x256xbf16>, vector<2x256xf32> -> vector<2x256xf32>
    %c2_i32_75 = arith.constant 2 : i32
    %281 = arith.muli %c5_i32, %c2_i32_75 : i32
    %282 = arith.index_cast %281 : i32 to index
    %c0_76 = arith.constant 0 : index
    %283 = vector.load %arg8[%282, %c0_76] : memref<16x128xf32, #tpu.memory_space<vmem>>, vector<2x128xf32>
    %284 = vector.extract_strided_slice %280 {offsets = [0, 0], sizes = [2, 128], strides = [1, 1]} : vector<2x256xf32> to vector<2x128xf32>
    %285 = arith.addf %283, %284 : vector<2x128xf32>
    %286 = vector.extract_strided_slice %285 {offsets = [0, 0], sizes = [2, 32], strides = [1, 1]} : vector<2x128xf32> to vector<2x32xf32>
    %287 = arith.negf %286 : vector<2x32xf32>
    %288 = math.exp %287 : vector<2x32xf32>
    %cst_77 = arith.constant 1.000000e+00 : f32
    %289 = vector.broadcast %cst_77 : f32 to vector<2x32xf32>
    %290 = arith.addf %289, %288 : vector<2x32xf32>
    %291 = arith.divf %289, %290 : vector<2x32xf32>
    %292 = vector.extract_strided_slice %285 {offsets = [0, 32], sizes = [2, 32], strides = [1, 1]} : vector<2x128xf32> to vector<2x32xf32>
    %293 = arith.negf %292 : vector<2x32xf32>
    %294 = math.exp %293 : vector<2x32xf32>
    %cst_78 = arith.constant 1.000000e+00 : f32
    %295 = vector.broadcast %cst_78 : f32 to vector<2x32xf32>
    %296 = arith.addf %295, %294 : vector<2x32xf32>
    %297 = arith.divf %295, %296 : vector<2x32xf32>
    %298 = vector.extract_strided_slice %285 {offsets = [0, 64], sizes = [2, 32], strides = [1, 1]} : vector<2x128xf32> to vector<2x32xf32>
    %299 = vector.extract_strided_slice %285 {offsets = [0, 96], sizes = [2, 32], strides = [1, 1]} : vector<2x128xf32> to vector<2x32xf32>
    %300 = arith.mulf %291, %299 : vector<2x32xf32>
    %301 = arith.addf %298, %300 : vector<2x32xf32>
    %302 = math.tanh %301 : vector<2x32xf32>
    %cst_79 = arith.constant 1.000000e+00 : f32
    %303 = vector.broadcast %cst_79 : f32 to vector<2x32xf32>
    %304 = arith.subf %303, %297 : vector<2x32xf32>
    %305 = arith.mulf %304, %302 : vector<2x32xf32>
    %306 = arith.mulf %297, %247 : vector<2x32xf32>
    %307 = arith.addf %305, %306 : vector<2x32xf32>
    %c1_i32_80 = arith.constant 1 : i32
    %308 = arith.subi %c5_i32, %c1_i32_80 : i32
    %309 = vector.extract_strided_slice %280 {offsets = [0, 128], sizes = [2, 128], strides = [1, 1]} : vector<2x256xf32> to vector<2x128xf32>
    %310 = arith.truncf %275 : vector<2x32xf32> to vector<2x32xbf16>
    %cst_81 = arith.constant dense<0.000000e+00> : vector<2x128xf32>
    %311 = tpu.matmul %310, %9, %cst_81 {dimension_numbers = #tpu.dot_dimension_numbers<[1], [0], [0], [1], [0, 0, 1, 1], [], []>} : vector<2x32xbf16>, vector<32x128xbf16>, vector<2x128xf32> -> vector<2x128xf32>
    %312 = arith.addf %309, %311 : vector<2x128xf32>
    %313 = arith.addf %312, %12 : vector<2x128xf32>
    %314 = vector.extract_strided_slice %313 {offsets = [0, 0], sizes = [2, 32], strides = [1, 1]} : vector<2x128xf32> to vector<2x32xf32>
    %315 = arith.negf %314 : vector<2x32xf32>
    %316 = math.exp %315 : vector<2x32xf32>
    %cst_82 = arith.constant 1.000000e+00 : f32
    %317 = vector.broadcast %cst_82 : f32 to vector<2x32xf32>
    %318 = arith.addf %317, %316 : vector<2x32xf32>
    %319 = arith.divf %317, %318 : vector<2x32xf32>
    %320 = vector.extract_strided_slice %313 {offsets = [0, 32], sizes = [2, 32], strides = [1, 1]} : vector<2x128xf32> to vector<2x32xf32>
    %321 = arith.negf %320 : vector<2x32xf32>
    %322 = math.exp %321 : vector<2x32xf32>
    %cst_83 = arith.constant 1.000000e+00 : f32
    %323 = vector.broadcast %cst_83 : f32 to vector<2x32xf32>
    %324 = arith.addf %323, %322 : vector<2x32xf32>
    %325 = arith.divf %323, %324 : vector<2x32xf32>
    %326 = vector.extract_strided_slice %313 {offsets = [0, 64], sizes = [2, 32], strides = [1, 1]} : vector<2x128xf32> to vector<2x32xf32>
    %327 = vector.extract_strided_slice %313 {offsets = [0, 96], sizes = [2, 32], strides = [1, 1]} : vector<2x128xf32> to vector<2x32xf32>
    %328 = arith.mulf %319, %327 : vector<2x32xf32>
    %329 = arith.addf %326, %328 : vector<2x32xf32>
    %330 = math.tanh %329 : vector<2x32xf32>
    %cst_84 = arith.constant 1.000000e+00 : f32
    %331 = vector.broadcast %cst_84 : f32 to vector<2x32xf32>
    %332 = arith.subf %331, %325 : vector<2x32xf32>
    %333 = arith.mulf %332, %330 : vector<2x32xf32>
    %334 = arith.mulf %325, %275 : vector<2x32xf32>
    %335 = arith.addf %333, %334 : vector<2x32xf32>
    %c2_i32_85 = arith.constant 2 : i32
    %336 = arith.muli %308, %c2_i32_85 : i32
    %337 = arith.index_cast %336 : i32 to index
    %c0_86 = arith.constant 0 : index
    %338 = vector.load %arg7[%337, %c0_86] : memref<16x32xf32, #tpu.memory_space<vmem>>, vector<2x32xf32>
    tpu.vector_store %arg7[%337, %c0_86], %335 {strides = array<i32>} : memref<16x32xf32, #tpu.memory_space<vmem>>, vector<2x32xf32>,
    %c6_i32 = arith.constant 6 : i32
    %339 = arith.truncf %307 : vector<2x32xf32> to vector<2x32xbf16>
    %cst_87 = arith.constant dense<0.000000e+00> : vector<2x256xf32>
    %340 = tpu.matmul %339, %8, %cst_87 {dimension_numbers = #tpu.dot_dimension_numbers<[1], [0], [0], [1], [0, 0, 1, 1], [], []>} : vector<2x32xbf16>, vector<32x256xbf16>, vector<2x256xf32> -> vector<2x256xf32>
    %c2_i32_88 = arith.constant 2 : i32
    %341 = arith.muli %c6_i32, %c2_i32_88 : i32
    %342 = arith.index_cast %341 : i32 to index
    %c0_89 = arith.constant 0 : index
    %343 = vector.load %arg8[%342, %c0_89] : memref<16x128xf32, #tpu.memory_space<vmem>>, vector<2x128xf32>
    %344 = vector.extract_strided_slice %340 {offsets = [0, 0], sizes = [2, 128], strides = [1, 1]} : vector<2x256xf32> to vector<2x128xf32>
    %345 = arith.addf %343, %344 : vector<2x128xf32>
    %346 = vector.extract_strided_slice %345 {offsets = [0, 0], sizes = [2, 32], strides = [1, 1]} : vector<2x128xf32> to vector<2x32xf32>
    %347 = arith.negf %346 : vector<2x32xf32>
    %348 = math.exp %347 : vector<2x32xf32>
    %cst_90 = arith.constant 1.000000e+00 : f32
    %349 = vector.broadcast %cst_90 : f32 to vector<2x32xf32>
    %350 = arith.addf %349, %348 : vector<2x32xf32>
    %351 = arith.divf %349, %350 : vector<2x32xf32>
    %352 = vector.extract_strided_slice %345 {offsets = [0, 32], sizes = [2, 32], strides = [1, 1]} : vector<2x128xf32> to vector<2x32xf32>
    %353 = arith.negf %352 : vector<2x32xf32>
    %354 = math.exp %353 : vector<2x32xf32>
    %cst_91 = arith.constant 1.000000e+00 : f32
    %355 = vector.broadcast %cst_91 : f32 to vector<2x32xf32>
    %356 = arith.addf %355, %354 : vector<2x32xf32>
    %357 = arith.divf %355, %356 : vector<2x32xf32>
    %358 = vector.extract_strided_slice %345 {offsets = [0, 64], sizes = [2, 32], strides = [1, 1]} : vector<2x128xf32> to vector<2x32xf32>
    %359 = vector.extract_strided_slice %345 {offsets = [0, 96], sizes = [2, 32], strides = [1, 1]} : vector<2x128xf32> to vector<2x32xf32>
    %360 = arith.mulf %351, %359 : vector<2x32xf32>
    %361 = arith.addf %358, %360 : vector<2x32xf32>
    %362 = math.tanh %361 : vector<2x32xf32>
    %cst_92 = arith.constant 1.000000e+00 : f32
    %363 = vector.broadcast %cst_92 : f32 to vector<2x32xf32>
    %364 = arith.subf %363, %357 : vector<2x32xf32>
    %365 = arith.mulf %364, %362 : vector<2x32xf32>
    %366 = arith.mulf %357, %307 : vector<2x32xf32>
    %367 = arith.addf %365, %366 : vector<2x32xf32>
    %c1_i32_93 = arith.constant 1 : i32
    %368 = arith.subi %c6_i32, %c1_i32_93 : i32
    %369 = vector.extract_strided_slice %340 {offsets = [0, 128], sizes = [2, 128], strides = [1, 1]} : vector<2x256xf32> to vector<2x128xf32>
    %370 = arith.truncf %335 : vector<2x32xf32> to vector<2x32xbf16>
    %cst_94 = arith.constant dense<0.000000e+00> : vector<2x128xf32>
    %371 = tpu.matmul %370, %9, %cst_94 {dimension_numbers = #tpu.dot_dimension_numbers<[1], [0], [0], [1], [0, 0, 1, 1], [], []>} : vector<2x32xbf16>, vector<32x128xbf16>, vector<2x128xf32> -> vector<2x128xf32>
    %372 = arith.addf %369, %371 : vector<2x128xf32>
    %373 = arith.addf %372, %12 : vector<2x128xf32>
    %374 = vector.extract_strided_slice %373 {offsets = [0, 0], sizes = [2, 32], strides = [1, 1]} : vector<2x128xf32> to vector<2x32xf32>
    %375 = arith.negf %374 : vector<2x32xf32>
    %376 = math.exp %375 : vector<2x32xf32>
    %cst_95 = arith.constant 1.000000e+00 : f32
    %377 = vector.broadcast %cst_95 : f32 to vector<2x32xf32>
    %378 = arith.addf %377, %376 : vector<2x32xf32>
    %379 = arith.divf %377, %378 : vector<2x32xf32>
    %380 = vector.extract_strided_slice %373 {offsets = [0, 32], sizes = [2, 32], strides = [1, 1]} : vector<2x128xf32> to vector<2x32xf32>
    %381 = arith.negf %380 : vector<2x32xf32>
    %382 = math.exp %381 : vector<2x32xf32>
    %cst_96 = arith.constant 1.000000e+00 : f32
    %383 = vector.broadcast %cst_96 : f32 to vector<2x32xf32>
    %384 = arith.addf %383, %382 : vector<2x32xf32>
    %385 = arith.divf %383, %384 : vector<2x32xf32>
    %386 = vector.extract_strided_slice %373 {offsets = [0, 64], sizes = [2, 32], strides = [1, 1]} : vector<2x128xf32> to vector<2x32xf32>
    %387 = vector.extract_strided_slice %373 {offsets = [0, 96], sizes = [2, 32], strides = [1, 1]} : vector<2x128xf32> to vector<2x32xf32>
    %388 = arith.mulf %379, %387 : vector<2x32xf32>
    %389 = arith.addf %386, %388 : vector<2x32xf32>
    %390 = math.tanh %389 : vector<2x32xf32>
    %cst_97 = arith.constant 1.000000e+00 : f32
    %391 = vector.broadcast %cst_97 : f32 to vector<2x32xf32>
    %392 = arith.subf %391, %385 : vector<2x32xf32>
    %393 = arith.mulf %392, %390 : vector<2x32xf32>
    %394 = arith.mulf %385, %335 : vector<2x32xf32>
    %395 = arith.addf %393, %394 : vector<2x32xf32>
    %c2_i32_98 = arith.constant 2 : i32
    %396 = arith.muli %368, %c2_i32_98 : i32
    %397 = arith.index_cast %396 : i32 to index
    %c0_99 = arith.constant 0 : index
    %398 = vector.load %arg7[%397, %c0_99] : memref<16x32xf32, #tpu.memory_space<vmem>>, vector<2x32xf32>
    tpu.vector_store %arg7[%397, %c0_99], %395 {strides = array<i32>} : memref<16x32xf32, #tpu.memory_space<vmem>>, vector<2x32xf32>,
    %c7_i32 = arith.constant 7 : i32
    %399 = arith.truncf %367 : vector<2x32xf32> to vector<2x32xbf16>
    %cst_100 = arith.constant dense<0.000000e+00> : vector<2x256xf32>
    %400 = tpu.matmul %399, %8, %cst_100 {dimension_numbers = #tpu.dot_dimension_numbers<[1], [0], [0], [1], [0, 0, 1, 1], [], []>} : vector<2x32xbf16>, vector<32x256xbf16>, vector<2x256xf32> -> vector<2x256xf32>
    %c2_i32_101 = arith.constant 2 : i32
    %401 = arith.muli %c7_i32, %c2_i32_101 : i32
    %402 = arith.index_cast %401 : i32 to index
    %c0_102 = arith.constant 0 : index
    %403 = vector.load %arg8[%402, %c0_102] : memref<16x128xf32, #tpu.memory_space<vmem>>, vector<2x128xf32>
    %404 = vector.extract_strided_slice %400 {offsets = [0, 0], sizes = [2, 128], strides = [1, 1]} : vector<2x256xf32> to vector<2x128xf32>
    %405 = arith.addf %403, %404 : vector<2x128xf32>
    %406 = vector.extract_strided_slice %405 {offsets = [0, 0], sizes = [2, 32], strides = [1, 1]} : vector<2x128xf32> to vector<2x32xf32>
    %407 = arith.negf %406 : vector<2x32xf32>
    %408 = math.exp %407 : vector<2x32xf32>
    %cst_103 = arith.constant 1.000000e+00 : f32
    %409 = vector.broadcast %cst_103 : f32 to vector<2x32xf32>
    %410 = arith.addf %409, %408 : vector<2x32xf32>
    %411 = arith.divf %409, %410 : vector<2x32xf32>
    %412 = vector.extract_strided_slice %405 {offsets = [0, 32], sizes = [2, 32], strides = [1, 1]} : vector<2x128xf32> to vector<2x32xf32>
    %413 = arith.negf %412 : vector<2x32xf32>
    %414 = math.exp %413 : vector<2x32xf32>
    %cst_104 = arith.constant 1.000000e+00 : f32
    %415 = vector.broadcast %cst_104 : f32 to vector<2x32xf32>
    %416 = arith.addf %415, %414 : vector<2x32xf32>
    %417 = arith.divf %415, %416 : vector<2x32xf32>
    %418 = vector.extract_strided_slice %405 {offsets = [0, 64], sizes = [2, 32], strides = [1, 1]} : vector<2x128xf32> to vector<2x32xf32>
    %419 = vector.extract_strided_slice %405 {offsets = [0, 96], sizes = [2, 32], strides = [1, 1]} : vector<2x128xf32> to vector<2x32xf32>
    %420 = arith.mulf %411, %419 : vector<2x32xf32>
    %421 = arith.addf %418, %420 : vector<2x32xf32>
    %422 = math.tanh %421 : vector<2x32xf32>
    %cst_105 = arith.constant 1.000000e+00 : f32
    %423 = vector.broadcast %cst_105 : f32 to vector<2x32xf32>
    %424 = arith.subf %423, %417 : vector<2x32xf32>
    %425 = arith.mulf %424, %422 : vector<2x32xf32>
    %426 = arith.mulf %417, %367 : vector<2x32xf32>
    %427 = arith.addf %425, %426 : vector<2x32xf32>
    %c1_i32_106 = arith.constant 1 : i32
    %428 = arith.subi %c7_i32, %c1_i32_106 : i32
    %429 = vector.extract_strided_slice %400 {offsets = [0, 128], sizes = [2, 128], strides = [1, 1]} : vector<2x256xf32> to vector<2x128xf32>
    %430 = arith.truncf %395 : vector<2x32xf32> to vector<2x32xbf16>
    %cst_107 = arith.constant dense<0.000000e+00> : vector<2x128xf32>
    %431 = tpu.matmul %430, %9, %cst_107 {dimension_numbers = #tpu.dot_dimension_numbers<[1], [0], [0], [1], [0, 0, 1, 1], [], []>} : vector<2x32xbf16>, vector<32x128xbf16>, vector<2x128xf32> -> vector<2x128xf32>
    %432 = arith.addf %429, %431 : vector<2x128xf32>
    %433 = arith.addf %432, %12 : vector<2x128xf32>
    %434 = vector.extract_strided_slice %433 {offsets = [0, 0], sizes = [2, 32], strides = [1, 1]} : vector<2x128xf32> to vector<2x32xf32>
    %435 = arith.negf %434 : vector<2x32xf32>
    %436 = math.exp %435 : vector<2x32xf32>
    %cst_108 = arith.constant 1.000000e+00 : f32
    %437 = vector.broadcast %cst_108 : f32 to vector<2x32xf32>
    %438 = arith.addf %437, %436 : vector<2x32xf32>
    %439 = arith.divf %437, %438 : vector<2x32xf32>
    %440 = vector.extract_strided_slice %433 {offsets = [0, 32], sizes = [2, 32], strides = [1, 1]} : vector<2x128xf32> to vector<2x32xf32>
    %441 = arith.negf %440 : vector<2x32xf32>
    %442 = math.exp %441 : vector<2x32xf32>
    %cst_109 = arith.constant 1.000000e+00 : f32
    %443 = vector.broadcast %cst_109 : f32 to vector<2x32xf32>
    %444 = arith.addf %443, %442 : vector<2x32xf32>
    %445 = arith.divf %443, %444 : vector<2x32xf32>
    %446 = vector.extract_strided_slice %433 {offsets = [0, 64], sizes = [2, 32], strides = [1, 1]} : vector<2x128xf32> to vector<2x32xf32>
    %447 = vector.extract_strided_slice %433 {offsets = [0, 96], sizes = [2, 32], strides = [1, 1]} : vector<2x128xf32> to vector<2x32xf32>
    %448 = arith.mulf %439, %447 : vector<2x32xf32>
    %449 = arith.addf %446, %448 : vector<2x32xf32>
    %450 = math.tanh %449 : vector<2x32xf32>
    %cst_110 = arith.constant 1.000000e+00 : f32
    %451 = vector.broadcast %cst_110 : f32 to vector<2x32xf32>
    %452 = arith.subf %451, %445 : vector<2x32xf32>
    %453 = arith.mulf %452, %450 : vector<2x32xf32>
    %454 = arith.mulf %445, %395 : vector<2x32xf32>
    %455 = arith.addf %453, %454 : vector<2x32xf32>
    %c2_i32_111 = arith.constant 2 : i32
    %456 = arith.muli %428, %c2_i32_111 : i32
    %457 = arith.index_cast %456 : i32 to index
    %c0_112 = arith.constant 0 : index
    %458 = vector.load %arg7[%457, %c0_112] : memref<16x32xf32, #tpu.memory_space<vmem>>, vector<2x32xf32>
    tpu.vector_store %arg7[%457, %c0_112], %455 {strides = array<i32>} : memref<16x32xf32, #tpu.memory_space<vmem>>, vector<2x32xf32>,
    %c7_i32_113 = arith.constant 7 : i32
    %459 = arith.truncf %427 : vector<2x32xf32> to vector<2x32xbf16>
    %cst_114 = arith.constant dense<0.000000e+00> : vector<2x256xf32>
    %460 = tpu.matmul %459, %8, %cst_114 {dimension_numbers = #tpu.dot_dimension_numbers<[1], [0], [0], [1], [0, 0, 1, 1], [], []>} : vector<2x32xbf16>, vector<32x256xbf16>, vector<2x256xf32> -> vector<2x256xf32>
    %461 = vector.extract_strided_slice %460 {offsets = [0, 128], sizes = [2, 128], strides = [1, 1]} : vector<2x256xf32> to vector<2x128xf32>
    %462 = arith.truncf %455 : vector<2x32xf32> to vector<2x32xbf16>
    %cst_115 = arith.constant dense<0.000000e+00> : vector<2x128xf32>
    %463 = tpu.matmul %462, %9, %cst_115 {dimension_numbers = #tpu.dot_dimension_numbers<[1], [0], [0], [1], [0, 0, 1, 1], [], []>} : vector<2x32xbf16>, vector<32x128xbf16>, vector<2x128xf32> -> vector<2x128xf32>
    %464 = arith.addf %461, %463 : vector<2x128xf32>
    %465 = arith.addf %464, %12 : vector<2x128xf32>
    %466 = vector.extract_strided_slice %465 {offsets = [0, 0], sizes = [2, 32], strides = [1, 1]} : vector<2x128xf32> to vector<2x32xf32>
    %467 = arith.negf %466 : vector<2x32xf32>
    %468 = math.exp %467 : vector<2x32xf32>
    %cst_116 = arith.constant 1.000000e+00 : f32
    %469 = vector.broadcast %cst_116 : f32 to vector<2x32xf32>
    %470 = arith.addf %469, %468 : vector<2x32xf32>
    %471 = arith.divf %469, %470 : vector<2x32xf32>
    %472 = vector.extract_strided_slice %465 {offsets = [0, 32], sizes = [2, 32], strides = [1, 1]} : vector<2x128xf32> to vector<2x32xf32>
    %473 = arith.negf %472 : vector<2x32xf32>
    %474 = math.exp %473 : vector<2x32xf32>
    %cst_117 = arith.constant 1.000000e+00 : f32
    %475 = vector.broadcast %cst_117 : f32 to vector<2x32xf32>
    %476 = arith.addf %475, %474 : vector<2x32xf32>
    %477 = arith.divf %475, %476 : vector<2x32xf32>
    %478 = vector.extract_strided_slice %465 {offsets = [0, 64], sizes = [2, 32], strides = [1, 1]} : vector<2x128xf32> to vector<2x32xf32>
    %479 = vector.extract_strided_slice %465 {offsets = [0, 96], sizes = [2, 32], strides = [1, 1]} : vector<2x128xf32> to vector<2x32xf32>
    %480 = arith.mulf %471, %479 : vector<2x32xf32>
    %481 = arith.addf %478, %480 : vector<2x32xf32>
    %482 = math.tanh %481 : vector<2x32xf32>
    %cst_118 = arith.constant 1.000000e+00 : f32
    %483 = vector.broadcast %cst_118 : f32 to vector<2x32xf32>
    %484 = arith.subf %483, %477 : vector<2x32xf32>
    %485 = arith.mulf %484, %482 : vector<2x32xf32>
    %486 = arith.mulf %477, %455 : vector<2x32xf32>
    %487 = arith.addf %485, %486 : vector<2x32xf32>
    %c14 = arith.constant 14 : index
    %c0_119 = arith.constant 0 : index
    %488 = vector.load %arg7[%c14, %c0_119] : memref<16x32xf32, #tpu.memory_space<vmem>>, vector<2x32xf32>
    tpu.vector_store %arg7[%c14, %c0_119], %487 {strides = array<i32>} : memref<16x32xf32, #tpu.memory_space<vmem>>, vector<2x32xf32>,
    return
  }
}

</mosaic_0001>

<llo_original>
// kernel: encoder_rnn_forward.1
$region0: #{encoder_rnn_forward.1}
  #allocation0 [shape = 'u32[]', space=smem, size = 0x4, offset = 0x4, fixed_abs, tag = 'smem constant byte address 0x4 - core index']
  #allocation1 [shape = 'u32[144,128]{1,0:T(1,128)}', space=vmem, size = 0x12000, scoped, tag = 'internal scratch']
  #allocation2 [shape = 'f32[16,128]{1,0:T(8,128)}', space=vmem, size = 0x2000, scoped, tag = 'scratch operand']
  %s0 = inlined_call_operand.vmem [shape: f32[16,16], index: 0, kind: input, shape index: {}]
  %s1 = inlined_call_operand.vmem [shape: f32[1,2,32], index: 1, kind: input, shape index: {}]
  %s2 = inlined_call_operand.hbm [shape: bf16[16,128], index: 2, kind: input, shape index: {}]
  %s3 = inlined_call_operand.hbm [shape: bf16[32,256], index: 3, kind: input, shape index: {}]
  %s4 = inlined_call_operand.hbm [shape: bf16[32,128], index: 4, kind: input, shape index: {}]
  %s5 = inlined_call_operand.vmem [shape: f32[1,128], index: 5, kind: input, shape index: {}]
  %s6 = inlined_call_operand.vmem [shape: f32[1,128], index: 6, kind: input, shape index: {}]
  %s7 = inlined_call_operand.vmem [shape: f32[16,32], index: 7, kind: output, shape index: {}]
  %s8 = sld [smem:[#allocation0]]
  $region50: #{encoder_rnn_forward.1} parent=0
    _
  %s10 = ssub.s32 1, %s8
  %s11 = scalar_select 0, %s10, %s8
  $region1: #{encoder_rnn_forward.1} parent=0
    #allocation3 [shape = 'u8[4096]{0}', space=vmem, size = 0x1000, scoped, tag = 'input window, operand 2, single buffered']
    #allocation4 [shape = 's32[1]{0}', space=sflag, size = 0x4, scoped, tag = 'scoped memory for encoder_rnn_forward.1']
    #allocation5 [shape = 'u8[16384]{0}', space=vmem, size = 0x4000, scoped, tag = 'input window, operand 3, single buffered']
    #allocation6 [shape = 's32[1]{0}', space=sflag, size = 0x4, scoped, tag = 'scoped memory for encoder_rnn_forward.1']
    #allocation7 [shape = 'u8[8192]{0}', space=vmem, size = 0x2000, scoped, tag = 'input window, operand 4, single buffered']
    %12 = vsyncpa [#allocation4], 0
    %13 = vsyncpa [#allocation6], 0
    // Predicated region
    $region2: #{encoder_rnn_forward.1} parent=1 // pred_check
      _
    $region3: #{encoder_rnn_forward.1} parent=1 // pred_check_branch
      %15 = sbr.rel (0) target = $region5
    $region4: #{encoder_rnn_forward.1} parent=1 // pred_region
      _
    $region5: #{encoder_rnn_forward.1} parent=1 // pred_fallthru
      _
    // Predicated region
    $region6: #{encoder_rnn_forward.1} parent=1 // pred_check
      _
    $region7: #{encoder_rnn_forward.1} parent=1 // pred_check_branch
      %17 = sbr.rel (0) target = $region9
    $region8: #{encoder_rnn_forward.1} parent=1 // pred_region
      _
    $region9: #{encoder_rnn_forward.1} parent=1 // pred_fallthru
      _
    // Predicated region
    $region10: #{encoder_rnn_forward.1} parent=1 // pred_check
      _
    $region11: #{encoder_rnn_forward.1} parent=1 // pred_check_branch
      %19 = sbr.rel (0) target = $region13
    $region12: #{encoder_rnn_forward.1} parent=1 // pred_region
      %s21 = ssub.s32 128, 128
      %22 = vsyncadd [#allocation4], %s21
      %s23 = sshll.u32 [#allocation3], 4
      %s24 = int_to_ptr.vmem [resolvable:$true] %s23
      %29 = dma.hbm_to_vmem [thread:$0]  %s2, 128, %s24, [#allocation4], 64, 64, 4
    $region13: #{encoder_rnn_forward.1} parent=1 // pred_fallthru
      _
    // Predicated region
    $region14: #{encoder_rnn_forward.1} parent=1 // pred_check
      _
    $region15: #{encoder_rnn_forward.1} parent=1 // pred_check_branch
      %31 = sbr.rel (0) target = $region17
    $region16: #{encoder_rnn_forward.1} parent=1 // pred_region
      %s33 = ssub.s32 512, 512
      %34 = vsyncadd [#allocation6], %s33
      %s35 = sshll.u32 [#allocation5], 4
      %s36 = int_to_ptr.vmem [resolvable:$true] %s35
      %41 = dma.hbm_to_vmem [thread:$0]  %s3, 512, %s36, [#allocation6], 128, 128, 8
    $region17: #{encoder_rnn_forward.1} parent=1 // pred_fallthru
      _
    // Predicated region
    $region18: #{encoder_rnn_forward.1} parent=1 // pred_check
      _
    $region19: #{encoder_rnn_forward.1} parent=1 // pred_check_branch
      %43 = sbr.rel (0) target = $region21
    $region20: #{encoder_rnn_forward.1} parent=1 // pred_region
      %s45 = ssub.s32 256, 256
      %46 = vsyncadd [#allocation6], %s45
      %s47 = sshll.u32 [#allocation7], 4
      %s48 = int_to_ptr.vmem [resolvable:$true] %s47
      %53 = dma.hbm_to_vmem [thread:$0]  %s4, 256, %s48, [#allocation6], 64, 64, 4
    $region21: #{encoder_rnn_forward.1} parent=1 // pred_fallthru
      _
    // Predicated region
    $region22: #{encoder_rnn_forward.1} parent=1 // pred_check
      _
    $region23: #{encoder_rnn_forward.1} parent=1 // pred_check_branch
      %55 = sbr.rel (0) target = $region25
    $region24: #{encoder_rnn_forward.1} parent=1 // pred_region
      _
    $region25: #{encoder_rnn_forward.1} parent=1 // pred_fallthru
      _
    // Predicated region
    $region26: #{encoder_rnn_forward.1} parent=1 // pred_check
      _
    $region27: #{encoder_rnn_forward.1} parent=1 // pred_check_branch
      %57 = sbr.rel (0) target = $region29
    $region28: #{encoder_rnn_forward.1} parent=1 // pred_region
      _
    $region29: #{encoder_rnn_forward.1} parent=1 // pred_fallthru
      _
    // Predicated region
    $region30: #{encoder_rnn_forward.1} parent=1 // pred_check
      _
    $region31: #{encoder_rnn_forward.1} parent=1 // pred_check_branch
      %59 = sbr.rel (0) target = $region33
    $region32: #{encoder_rnn_forward.1} parent=1 // pred_region
      %60 = dma.done [#allocation4], 128
    $region33: #{encoder_rnn_forward.1} parent=1 // pred_fallthru
      _
    // Predicated region
    $region34: #{encoder_rnn_forward.1} parent=1 // pred_check
      _
    $region35: #{encoder_rnn_forward.1} parent=1 // pred_check_branch
      %62 = sbr.rel (0) target = $region37
    $region36: #{encoder_rnn_forward.1} parent=1 // pred_region
      %63 = dma.done [#allocation6], 512
    $region37: #{encoder_rnn_forward.1} parent=1 // pred_fallthru
      _
    // Predicated region
    $region38: #{encoder_rnn_forward.1} parent=1 // pred_check
      _
    $region39: #{encoder_rnn_forward.1} parent=1 // pred_check_branch
      %65 = sbr.rel (0) target = $region41
    $region40: #{encoder_rnn_forward.1} parent=1 // pred_region
      %66 = dma.done [#allocation6], 256
    $region41: #{encoder_rnn_forward.1} parent=1 // pred_fallthru
      _
    %v68 = vld [vmem:[%s0] sm:$0xff]
    %v69 = vld [vmem:[%s0 + $0x8] sm:$0xff]
    %v70 = vpack.c.bf16 %v69, %v68
    %v71 = vld [vmem:[#allocation3] sm:$0xf]
    %v72 = vld [vmem:[#allocation3 + $0x4] sm:$0xf]
    %v73 = vld [vmem:[%s5] sm:$0x1]
    %v75 = vlaneseq
    %v76 = vshrl.u32 %v75, 7
    %v77 = vsub.s32 0, %v76
    %v78 = vrot.slane %v73, %v77
    %v82 = vunpack.c.l.b16 %v71
    %v83 = vunpack.c.l.b16 %v72
    %v84 = vpack.c.b16 %v83, %v82
    %vm86 = vcmask 130048
    %v88 = vsel %vm86, %v70, 0
    %90 = vmatprep.subr.bf16.mxu0 0
    %91 = vmatpush1.bf16.msra.mxu0 %v84
    %92 = vmatprep.subr.bf16.mxu0 0
    %93 = vmatpush1.bf16.msra.mxu0 0
    %94 = vmatprep.subr.bf16.mxu0 0
    %95 = vmatpush1.bf16.msra.mxu0 0
    %96 = vmatprep.subr.bf16.mxu0 0
    %97 = vmatpush1.bf16.msra.mxu0 0
    %98 = vmatprep.subr.bf16.mxu0 0
    %99 = vmatpush1.bf16.msra.mxu0 0
    %100 = vmatprep.subr.bf16.mxu0 0
    %101 = vmatpush1.bf16.msra.mxu0 0
    %102 = vmatprep.subr.bf16.mxu0 0
    %103 = vmatpush1.bf16.msra.mxu0 0
    %104 = vmatprep.subr.bf16.mxu0 0
    %105 = vmatpush1.bf16.msra.mxu0 0
    %106 = vmatprep.subr.bf16.mxu0 0
    %107 = vmatpush1.bf16.msra.mxu0 0
    %108 = vmatprep.subr.bf16.mxu0 0
    %109 = vmatpush1.bf16.msra.mxu0 0
    %110 = vmatprep.subr.bf16.mxu0 0
    %111 = vmatpush1.bf16.msra.mxu0 0
    %112 = vmatprep.subr.bf16.mxu0 0
    %113 = vmatpush1.bf16.msra.mxu0 0
    %114 = vmatprep.subr.bf16.mxu0 0
    %115 = vmatpush1.bf16.msra.mxu0 0
    %116 = vmatprep.subr.bf16.mxu0 0
    %117 = vmatpush1.bf16.msra.mxu0 0
    %118 = vmatprep.subr.bf16.mxu0 0
    %119 = vmatpush1.bf16.msra.mxu0 0
    %120 = vmatprep.subr.bf16.mxu0 0
    %121 = vmatpush1.bf16.msra.mxu0 0
    %122 = vmatprep.mubr.bf16.mxu0 0
    %123 = vmatmul.mubr.bf16.gmra.mrb[0].mxu0 %v88
    %v124 = vpop.f32.mrb[0].mxu0
    %v125 = vadd.f32 %v78, %v124
    %v126 = vpop.f32.mrb[0].mxu0
    %v127 = vpop.f32.mrb[0].mxu0
    %v128 = vadd.f32 %v78, %v127
    %v129 = vpop.f32.mrb[0].mxu0
    %130 = vdwg.mxu0
    %131 = vst [vmem:[#allocation2] sm:$0xff] %v125
    %132 = vst [vmem:[#allocation2 + $0x8] sm:$0xff] %v128
    %v133 = vld [vmem:[#allocation5] sm:$0xff]
    %v134 = vld [vmem:[#allocation5 + $0x8] sm:$0xff]
    %v135 = vld [vmem:[#allocation5 + $0x10] sm:$0xff]
    %v136 = vld [vmem:[#allocation5 + $0x18] sm:$0xff]
    %v137 = vld [vmem:[#allocation7] sm:$0xf]
    %v138 = vld [vmem:[#allocation7 + $0x4] sm:$0xf]
    %v139 = vld [vmem:[#allocation7 + $0x8] sm:$0xf]
    %v140 = vld [vmem:[#allocation7 + $0xc] sm:$0xf]
    %v141 = vld [vmem:[%s6] sm:$0x1]
    %v143 = vlaneseq
    %v144 = vshrl.u32 %v143, 7
    %v145 = vsub.s32 0, %v144
    %v146 = vrot.slane %v141, %v145
    %v148 = vld [vmem:[#allocation2] sm:$0x3]
    %v149 = vxor.u32 %v148, 2147483648
    %v150 = vmul.f32 %v149, 1.442695
    %v151 = vpow.pop %v150
    %v152 = vadd.f32 %v151, 1.0
    %v153 = vrcp.pop %v152
    %v154 = vmul.f32 1.0, %v153
    %156 = vrot.lane.b32.xlu0 %v148, 32
    %v157 = vpop.permute.xlu0 %156
    %v159 = vmul.f32 %v154, %v157
    %161 = vrot.lane.b32.xlu0 %v159, 64
    %v162 = vpop.permute.xlu0 %161
    %v164 = vadd.f32 %v148, %v162
    %v165 = vtanh.pop %v164
    %v166 = vsub.f32 1.0, %v154
    %168 = vrot.lane.b32.xlu0 %v165, 96
    %v169 = vpop.permute.xlu0 %168
    %v171 = vmul.f32 %v166, %v169
    %v172 = vmul.f32 %v154, 0.0
    %v173 = vadd.f32 %v171, %v172
    %v174 = vld [vmem:[%s1] sm:$0x3]
    %v175 = vpack.c.bf16 %v173, %v173
    %177 = vrot.lane.b32.xlu0 %v175, 96
    %v178 = vpop.permute.xlu0 %177
    %v183 = vunpack.c.l.b16 %v133
    %v184 = vunpack.c.h.b16 %v133
    %v185 = vunpack.c.l.b16 %v134
    %v186 = vunpack.c.h.b16 %v134
    %v187 = vunpack.c.l.b16 %v135
    %v188 = vunpack.c.h.b16 %v135
    %v189 = vunpack.c.l.b16 %v136
    %v190 = vunpack.c.h.b16 %v136
    %v191 = vpack.c.b16 %v185, %v183
    %v192 = vpack.c.b16 %v186, %v184
    %v193 = vpack.c.b16 %v189, %v187
    %v194 = vpack.c.b16 %v190, %v188
    %vm199 = vcmask 261120
    %v201 = vsel %vm199, %v178, 0
    %203 = vmatprep.subr.bf16.mxu0 %v192
    %204 = vmatpush1.bf16.msra.mxu0 %v191
    %205 = vmatprep.subr.bf16.mxu0 %v194
    %206 = vmatpush1.bf16.msra.mxu0 %v193
    %207 = vmatprep.subr.bf16.mxu0 0
    %208 = vmatpush1.bf16.msra.mxu0 0
    %209 = vmatprep.subr.bf16.mxu0 0
    %210 = vmatpush1.bf16.msra.mxu0 0
    %211 = vmatprep.subr.bf16.mxu0 0
    %212 = vmatpush1.bf16.msra.mxu0 0
    %213 = vmatprep.subr.bf16.mxu0 0
    %214 = vmatpush1.bf16.msra.mxu0 0
    %215 = vmatprep.subr.bf16.mxu0 0
    %216 = vmatpush1.bf16.msra.mxu0 0
    %217 = vmatprep.subr.bf16.mxu0 0
    %218 = vmatpush1.bf16.msra.mxu0 0
    %219 = vmatprep.subr.bf16.mxu0 0
    %220 = vmatpush1.bf16.msra.mxu0 0
    %221 = vmatprep.subr.bf16.mxu0 0
    %222 = vmatpush1.bf16.msra.mxu0 0
    %223 = vmatprep.subr.bf16.mxu0 0
    %224 = vmatpush1.bf16.msra.mxu0 0
    %225 = vmatprep.subr.bf16.mxu0 0
    %226 = vmatpush1.bf16.msra.mxu0 0
    %227 = vmatprep.subr.bf16.mxu0 0
    %228 = vmatpush1.bf16.msra.mxu0 0
    %229 = vmatprep.subr.bf16.mxu0 0
    %230 = vmatpush1.bf16.msra.mxu0 0
    %231 = vmatprep.subr.bf16.mxu0 0
    %232 = vmatpush1.bf16.msra.mxu0 0
    %233 = vmatprep.subr.bf16.mxu0 0
    %234 = vmatpush1.bf16.msra.mxu0 0
    %235 = vmatprep.mubr.bf16.mxu0 0
    %236 = vmatmul.mubr.bf16.gmra.mrb[0].mxu0 %v201
    %v237 = vpop.f32.mrb[0].mxu0
    %v238 = vadd.f32 0.0, %v237
    %v239 = vpop.f32.mrb[0].mxu0
    %v240 = vadd.f32 0.0, %v239
    %v241 = vpop.f32.mrb[0].mxu0
    %v242 = vpop.f32.mrb[0].mxu0
    %243 = vdwg.mxu0
    %v244 = vld [vmem:[#allocation2 + $0x2] sm:$0x3]
    %v245 = vadd.f32 %v244, %v238
    %v246 = vxor.u32 %v245, 2147483648
    %v247 = vmul.f32 %v246, 1.442695
    %v248 = vpow.pop %v247
    %v249 = vadd.f32 %v248, 1.0
    %v250 = vrcp.pop %v249
    %v251 = vmul.f32 1.0, %v250
    %253 = vrot.lane.b32.xlu0 %v245, 32
    %v254 = vpop.permute.xlu0 %253
    %v256 = vmul.f32 %v251, %v254
    %258 = vrot.lane.b32.xlu0 %v256, 64
    %v259 = vpop.permute.xlu0 %258
    %v261 = vadd.f32 %v245, %v259
    %v262 = vtanh.pop %v261
    %v263 = vsub.f32 1.0, %v251
    %265 = vrot.lane.b32.xlu0 %v262, 96
    %v266 = vpop.permute.xlu0 %265
    %v268 = vmul.f32 %v263, %v266
    %v269 = vmul.f32 %v251, %v173
    %v270 = vadd.f32 %v268, %v269
    %v271 = vpack.c.bf16 %v174, %v174
    %v276 = vunpack.c.l.b16 %v137
    %v277 = vunpack.c.l.b16 %v138
    %v278 = vunpack.c.l.b16 %v139
    %v279 = vunpack.c.l.b16 %v140
    %v280 = vpack.c.b16 %v277, %v276
    %v281 = vpack.c.b16 %v279, %v278
    %v285 = vsel %vm199, %v271, 0
    %287 = vmatprep.subr.bf16.mxu0 0
    %288 = vmatpush1.bf16.msra.mxu0 %v280
    %289 = vmatprep.subr.bf16.mxu0 0
    %290 = vmatpush1.bf16.msra.mxu0 %v281
    %291 = vmatprep.subr.bf16.mxu0 0
    %292 = vmatpush1.bf16.msra.mxu0 0
    %293 = vmatprep.subr.bf16.mxu0 0
    %294 = vmatpush1.bf16.msra.mxu0 0
    %295 = vmatprep.subr.bf16.mxu0 0
    %296 = vmatpush1.bf16.msra.mxu0 0
    %297 = vmatprep.subr.bf16.mxu0 0
    %298 = vmatpush1.bf16.msra.mxu0 0
    %299 = vmatprep.subr.bf16.mxu0 0
    %300 = vmatpush1.bf16.msra.mxu0 0
    %301 = vmatprep.subr.bf16.mxu0 0
    %302 = vmatpush1.bf16.msra.mxu0 0
    %303 = vmatprep.subr.bf16.mxu0 0
    %304 = vmatpush1.bf16.msra.mxu0 0
    %305 = vmatprep.subr.bf16.mxu0 0
    %306 = vmatpush1.bf16.msra.mxu0 0
    %307 = vmatprep.subr.bf16.mxu0 0
    %308 = vmatpush1.bf16.msra.mxu0 0
    %309 = vmatprep.subr.bf16.mxu0 0
    %310 = vmatpush1.bf16.msra.mxu0 0
    %311 = vmatprep.subr.bf16.mxu0 0
    %312 = vmatpush1.bf16.msra.mxu0 0
    %313 = vmatprep.subr.bf16.mxu0 0
    %314 = vmatpush1.bf16.msra.mxu0 0
    %315 = vmatprep.subr.bf16.mxu0 0
    %316 = vmatpush1.bf16.msra.mxu0 0
    %317 = vmatprep.subr.bf16.mxu0 0
    %318 = vmatpush1.bf16.msra.mxu0 0
    %319 = vmatprep.mubr.bf16.mxu0 0
    %320 = vmatmul.mubr.bf16.gmra.mrb[0].mxu0 %v285
    %v321 = vpop.f32.mrb[0].mxu0
    %v322 = vadd.f32 0.0, %v321
    %v323 = vpop.f32.mrb[0].mxu0
    %v324 = vpop.f32.mrb[0].mxu0
    %v325 = vpop.f32.mrb[0].mxu0
    %326 = vdwg.mxu0
    %v327 = vadd.f32 %v240, %v322
    %v328 = vadd.f32 %v327, %v146
    %v329 = vxor.u32 %v328, 2147483648
    %v330 = vmul.f32 %v329, 1.442695
    %v331 = vpow.pop %v330
    %v332 = vadd.f32 %v331, 1.0
    %v333 = vrcp.pop %v332
    %v334 = vmul.f32 1.0, %v333
    %336 = vrot.lane.b32.xlu0 %v328, 32
    %v337 = vpop.permute.xlu0 %336
    %v339 = vmul.f32 %v334, %v337
    %341 = vrot.lane.b32.xlu0 %v339, 64
    %v342 = vpop.permute.xlu0 %341
    %v344 = vadd.f32 %v328, %v342
    %v345 = vtanh.pop %v344
    %v346 = vsub.f32 1.0, %v334
    %348 = vrot.lane.b32.xlu0 %v345, 96
    %v349 = vpop.permute.xlu0 %348
    %v351 = vmul.f32 %v346, %v349
    %353 = vrot.lane.b32.xlu0 %v174, 32
    %v354 = vpop.permute.xlu0 %353
    %v356 = vmul.f32 %v334, %v354
    %v357 = vadd.f32 %v351, %v356
    %359 = vrot.lane.b32.xlu0 %v357, 96
    %v360 = vpop.permute.xlu0 %359
    %vm362 = vcmask 254976
    %363 = vst.msk [vmem:[%s7] sm:$0x3] %vm362, %v360
    %v364 = vpack.c.bf16 %v270, %v270
    %366 = vrot.lane.b32.xlu0 %v364, 96
    %v367 = vpop.permute.xlu0 %366
    %v369 = vsel %vm199, %v367, 0
    %371 = vmatprep.subr.bf16.mxu0 %v192
    %372 = vmatpush1.bf16.msra.mxu0 %v191
    %373 = vmatprep.subr.bf16.mxu0 %v194
    %374 = vmatpush1.bf16.msra.mxu0 %v193
    %375 = vmatprep.subr.bf16.mxu0 0
    %376 = vmatpush1.bf16.msra.mxu0 0
    %377 = vmatprep.subr.bf16.mxu0 0
    %378 = vmatpush1.bf16.msra.mxu0 0
    %379 = vmatprep.subr.bf16.mxu0 0
    %380 = vmatpush1.bf16.msra.mxu0 0
    %381 = vmatprep.subr.bf16.mxu0 0
    %382 = vmatpush1.bf16.msra.mxu0 0
    %383 = vmatprep.subr.bf16.mxu0 0
    %384 = vmatpush1.bf16.msra.mxu0 0
    %385 = vmatprep.subr.bf16.mxu0 0
    %386 = vmatpush1.bf16.msra.mxu0 0
    %387 = vmatprep.subr.bf16.mxu0 0
    %388 = vmatpush1.bf16.msra.mxu0 0
    %389 = vmatprep.subr.bf16.mxu0 0
    %390 = vmatpush1.bf16.msra.mxu0 0
    %391 = vmatprep.subr.bf16.mxu0 0
    %392 = vmatpush1.bf16.msra.mxu0 0
    %393 = vmatprep.subr.bf16.mxu0 0
    %394 = vmatpush1.bf16.msra.mxu0 0
    %395 = vmatprep.subr.bf16.mxu0 0
    %396 = vmatpush1.bf16.msra.mxu0 0
    %397 = vmatprep.subr.bf16.mxu0 0
    %398 = vmatpush1.bf16.msra.mxu0 0
    %399 = vmatprep.subr.bf16.mxu0 0
    %400 = vmatpush1.bf16.msra.mxu0 0
    %401 = vmatprep.subr.bf16.mxu0 0
    %402 = vmatpush1.bf16.msra.mxu0 0
    %403 = vmatprep.mubr.bf16.mxu0 0
    %404 = vmatmul.mubr.bf16.gmra.mrb[0].mxu0 %v369
    %v405 = vpop.f32.mrb[0].mxu0
    %v406 = vadd.f32 0.0, %v405
    %v407 = vpop.f32.mrb[0].mxu0
    %v408 = vadd.f32 0.0, %v407
    %v409 = vpop.f32.mrb[0].mxu0
    %v410 = vpop.f32.mrb[0].mxu0
    %411 = vdwg.mxu0
    %v412 = vld [vmem:[#allocation2 + $0x4] sm:$0x3]
    %v413 = vadd.f32 %v412, %v406
    %v414 = vxor.u32 %v413, 2147483648
    %v415 = vmul.f32 %v414, 1.442695
    %v416 = vpow.pop %v415
    %v417 = vadd.f32 %v416, 1.0
    %v418 = vrcp.pop %v417
    %v419 = vmul.f32 1.0, %v418
    %421 = vrot.lane.b32.xlu0 %v413, 32
    %v422 = vpop.permute.xlu0 %421
    %v424 = vmul.f32 %v419, %v422
    %426 = vrot.lane.b32.xlu0 %v424, 64
    %v427 = vpop.permute.xlu0 %426
    %v429 = vadd.f32 %v413, %v427
    %v430 = vtanh.pop %v429
    %v431 = vsub.f32 1.0, %v419
    %433 = vrot.lane.b32.xlu0 %v430, 96
    %v434 = vpop.permute.xlu0 %433
    %v436 = vmul.f32 %v431, %v434
    %v437 = vmul.f32 %v419, %v270
    %v438 = vadd.f32 %v436, %v437
    %v439 = vpack.c.bf16 %v357, %v357
    %441 = vrot.lane.b32.xlu0 %v439, 96
    %v442 = vpop.permute.xlu0 %441
    %v444 = vsel %vm199, %v442, 0
    %446 = vmatprep.subr.bf16.mxu0 0
    %447 = vmatpush1.bf16.msra.mxu0 %v280
    %448 = vmatprep.subr.bf16.mxu0 0
    %449 = vmatpush1.bf16.msra.mxu0 %v281
    %450 = vmatprep.subr.bf16.mxu0 0
    %451 = vmatpush1.bf16.msra.mxu0 0
    %452 = vmatprep.subr.bf16.mxu0 0
    %453 = vmatpush1.bf16.msra.mxu0 0
    %454 = vmatprep.subr.bf16.mxu0 0
    %455 = vmatpush1.bf16.msra.mxu0 0
    %456 = vmatprep.subr.bf16.mxu0 0
    %457 = vmatpush1.bf16.msra.mxu0 0
    %458 = vmatprep.subr.bf16.mxu0 0
    %459 = vmatpush1.bf16.msra.mxu0 0
    %460 = vmatprep.subr.bf16.mxu0 0
    %461 = vmatpush1.bf16.msra.mxu0 0
    %462 = vmatprep.subr.bf16.mxu0 0
    %463 = vmatpush1.bf16.msra.mxu0 0
    %464 = vmatprep.subr.bf16.mxu0 0
    %465 = vmatpush1.bf16.msra.mxu0 0
    %466 = vmatprep.subr.bf16.mxu0 0
    %467 = vmatpush1.bf16.msra.mxu0 0
    %468 = vmatprep.subr.bf16.mxu0 0
    %469 = vmatpush1.bf16.msra.mxu0 0
    %470 = vmatprep.subr.bf16.mxu0 0
    %471 = vmatpush1.bf16.msra.mxu0 0
    %472 = vmatprep.subr.bf16.mxu0 0
    %473 = vmatpush1.bf16.msra.mxu0 0
    %474 = vmatprep.subr.bf16.mxu0 0
    %475 = vmatpush1.bf16.msra.mxu0 0
    %476 = vmatprep.subr.bf16.mxu0 0
    %477 = vmatpush1.bf16.msra.mxu0 0
    %478 = vmatprep.mubr.bf16.mxu0 0
    %479 = vmatmul.mubr.bf16.gmra.mrb[0].mxu0 %v444
    %v480 = vpop.f32.mrb[0].mxu0
    %v481 = vadd.f32 0.0, %v480
    %v482 = vpop.f32.mrb[0].mxu0
    %v483 = vpop.f32.mrb[0].mxu0
    %v484 = vpop.f32.mrb[0].mxu0
    %485 = vdwg.mxu0
    %v486 = vadd.f32 %v408, %v481
    %v487 = vadd.f32 %v486, %v146
    %v488 = vxor.u32 %v487, 2147483648
    %v489 = vmul.f32 %v488, 1.442695
    %v490 = vpow.pop %v489
    %v491 = vadd.f32 %v490, 1.0
    %v492 = vrcp.pop %v491
    %v493 = vmul.f32 1.0, %v492
    %495 = vrot.lane.b32.xlu0 %v487, 32
    %v496 = vpop.permute.xlu0 %495
    %v498 = vmul.f32 %v493, %v496
    %500 = vrot.lane.b32.xlu0 %v498, 64
    %v501 = vpop.permute.xlu0 %500
    %v503 = vadd.f32 %v487, %v501
    %v504 = vtanh.pop %v503
    %v505 = vsub.f32 1.0, %v493
    %507 = vrot.lane.b32.xlu0 %v504, 96
    %v508 = vpop.permute.xlu0 %507
    %v510 = vmul.f32 %v505, %v508
    %v511 = vmul.f32 %v493, %v357
    %v512 = vadd.f32 %v510, %v511
    %514 = vrot.lane.b32.xlu0 %v512, 96
    %v515 = vpop.permute.xlu0 %514
    %517 = vst.msk [vmem:[%s7 + $0x2] sm:$0x3] %vm362, %v515
    %v518 = vpack.c.bf16 %v438, %v438
    %520 = vrot.lane.b32.xlu0 %v518, 96
    %v521 = vpop.permute.xlu0 %520
    %v523 = vsel %vm199, %v521, 0
    %525 = vmatprep.subr.bf16.mxu0 %v192
    %526 = vmatpush1.bf16.msra.mxu0 %v191
    %527 = vmatprep.subr.bf16.mxu0 %v194
    %528 = vmatpush1.bf16.msra.mxu0 %v193
    %529 = vmatprep.subr.bf16.mxu0 0
    %530 = vmatpush1.bf16.msra.mxu0 0
    %531 = vmatprep.subr.bf16.mxu0 0
    %532 = vmatpush1.bf16.msra.mxu0 0
    %533 = vmatprep.subr.bf16.mxu0 0
    %534 = vmatpush1.bf16.msra.mxu0 0
    %535 = vmatprep.subr.bf16.mxu0 0
    %536 = vmatpush1.bf16.msra.mxu0 0
    %537 = vmatprep.subr.bf16.mxu0 0
    %538 = vmatpush1.bf16.msra.mxu0 0
    %539 = vmatprep.subr.bf16.mxu0 0
    %540 = vmatpush1.bf16.msra.mxu0 0
    %541 = vmatprep.subr.bf16.mxu0 0
    %542 = vmatpush1.bf16.msra.mxu0 0
    %543 = vmatprep.subr.bf16.mxu0 0
    %544 = vmatpush1.bf16.msra.mxu0 0
    %545 = vmatprep.subr.bf16.mxu0 0
    %546 = vmatpush1.bf16.msra.mxu0 0
    %547 = vmatprep.subr.bf16.mxu0 0
    %548 = vmatpush1.bf16.msra.mxu0 0
    %549 = vmatprep.subr.bf16.mxu0 0
    %550 = vmatpush1.bf16.msra.mxu0 0
    %551 = vmatprep.subr.bf16.mxu0 0
    %552 = vmatpush1.bf16.msra.mxu0 0
    %553 = vmatprep.subr.bf16.mxu0 0
    %554 = vmatpush1.bf16.msra.mxu0 0
    %555 = vmatprep.subr.bf16.mxu0 0
    %556 = vmatpush1.bf16.msra.mxu0 0
    %557 = vmatprep.mubr.bf16.mxu0 0
    %558 = vmatmul.mubr.bf16.gmra.mrb[0].mxu0 %v523
    %v559 = vpop.f32.mrb[0].mxu0
    %v560 = vadd.f32 0.0, %v559
    %v561 = vpop.f32.mrb[0].mxu0
    %v562 = vadd.f32 0.0, %v561
    %v563 = vpop.f32.mrb[0].mxu0
    %v564 = vpop.f32.mrb[0].mxu0
    %565 = vdwg.mxu0
    %v566 = vld [vmem:[#allocation2 + $0x6] sm:$0x3]
    %v567 = vadd.f32 %v566, %v560
    %v568 = vxor.u32 %v567, 2147483648
    %v569 = vmul.f32 %v568, 1.442695
    %v570 = vpow.pop %v569
    %v571 = vadd.f32 %v570, 1.0
    %v572 = vrcp.pop %v571
    %v573 = vmul.f32 1.0, %v572
    %575 = vrot.lane.b32.xlu0 %v567, 32
    %v576 = vpop.permute.xlu0 %575
    %v578 = vmul.f32 %v573, %v576
    %580 = vrot.lane.b32.xlu0 %v578, 64
    %v581 = vpop.permute.xlu0 %580
    %v583 = vadd.f32 %v567, %v581
    %v584 = vtanh.pop %v583
    %v585 = vsub.f32 1.0, %v573
    %587 = vrot.lane.b32.xlu0 %v584, 96
    %v588 = vpop.permute.xlu0 %587
    %v590 = vmul.f32 %v585, %v588
    %v591 = vmul.f32 %v573, %v438
    %v592 = vadd.f32 %v590, %v591
    %v593 = vpack.c.bf16 %v512, %v512
    %595 = vrot.lane.b32.xlu0 %v593, 96
    %v596 = vpop.permute.xlu0 %595
    %v598 = vsel %vm199, %v596, 0
    %600 = vmatprep.subr.bf16.mxu0 0
    %601 = vmatpush1.bf16.msra.mxu0 %v280
    %602 = vmatprep.subr.bf16.mxu0 0
    %603 = vmatpush1.bf16.msra.mxu0 %v281
    %604 = vmatprep.subr.bf16.mxu0 0
    %605 = vmatpush1.bf16.msra.mxu0 0
    %606 = vmatprep.subr.bf16.mxu0 0
    %607 = vmatpush1.bf16.msra.mxu0 0
    %608 = vmatprep.subr.bf16.mxu0 0
    %609 = vmatpush1.bf16.msra.mxu0 0
    %610 = vmatprep.subr.bf16.mxu0 0
    %611 = vmatpush1.bf16.msra.mxu0 0
    %612 = vmatprep.subr.bf16.mxu0 0
    %613 = vmatpush1.bf16.msra.mxu0 0
    %614 = vmatprep.subr.bf16.mxu0 0
    %615 = vmatpush1.bf16.msra.mxu0 0
    %616 = vmatprep.subr.bf16.mxu0 0
    %617 = vmatpush1.bf16.msra.mxu0 0
    %618 = vmatprep.subr.bf16.mxu0 0
    %619 = vmatpush1.bf16.msra.mxu0 0
    %620 = vmatprep.subr.bf16.mxu0 0
    %621 = vmatpush1.bf16.msra.mxu0 0
    %622 = vmatprep.subr.bf16.mxu0 0
    %623 = vmatpush1.bf16.msra.mxu0 0
    %624 = vmatprep.subr.bf16.mxu0 0
    %625 = vmatpush1.bf16.msra.mxu0 0
    %626 = vmatprep.subr.bf16.mxu0 0
    %627 = vmatpush1.bf16.msra.mxu0 0
    %628 = vmatprep.subr.bf16.mxu0 0
    %629 = vmatpush1.bf16.msra.mxu0 0
    %630 = vmatprep.subr.bf16.mxu0 0
    %631 = vmatpush1.bf16.msra.mxu0 0
    %632 = vmatprep.mubr.bf16.mxu0 0
    %633 = vmatmul.mubr.bf16.gmra.mrb[0].mxu0 %v598
    %v634 = vpop.f32.mrb[0].mxu0
    %v635 = vadd.f32 0.0, %v634
    %v636 = vpop.f32.mrb[0].mxu0
    %v637 = vpop.f32.mrb[0].mxu0
    %v638 = vpop.f32.mrb[0].mxu0
    %639 = vdwg.mxu0
    %v640 = vadd.f32 %v562, %v635
    %v641 = vadd.f32 %v640, %v146
    %v642 = vxor.u32 %v641, 2147483648
    %v643 = vmul.f32 %v642, 1.442695
    %v644 = vpow.pop %v643
    %v645 = vadd.f32 %v644, 1.0
    %v646 = vrcp.pop %v645
    %v647 = vmul.f32 1.0, %v646
    %649 = vrot.lane.b32.xlu0 %v641, 32
    %v650 = vpop.permute.xlu0 %649
    %v652 = vmul.f32 %v647, %v650
    %654 = vrot.lane.b32.xlu0 %v652, 64
    %v655 = vpop.permute.xlu0 %654
    %v657 = vadd.f32 %v641, %v655
    %v658 = vtanh.pop %v657
    %v659 = vsub.f32 1.0, %v647
    %661 = vrot.lane.b32.xlu0 %v658, 96
    %v662 = vpop.permute.xlu0 %661
    %v664 = vmul.f32 %v659, %v662
    %v665 = vmul.f32 %v647, %v512
    %v666 = vadd.f32 %v664, %v665
    %668 = vrot.lane.b32.xlu0 %v666, 96
    %v669 = vpop.permute.xlu0 %668
    %671 = vst.msk [vmem:[%s7 + $0x4] sm:$0x3] %vm362, %v669
    %v672 = vpack.c.bf16 %v592, %v592
    %674 = vrot.lane.b32.xlu0 %v672, 96
    %v675 = vpop.permute.xlu0 %674
    %v677 = vsel %vm199, %v675, 0
    %679 = vmatprep.subr.bf16.mxu0 %v192
    %680 = vmatpush1.bf16.msra.mxu0 %v191
    %681 = vmatprep.subr.bf16.mxu0 %v194
    %682 = vmatpush1.bf16.msra.mxu0 %v193
    %683 = vmatprep.subr.bf16.mxu0 0
    %684 = vmatpush1.bf16.msra.mxu0 0
    %685 = vmatprep.subr.bf16.mxu0 0
    %686 = vmatpush1.bf16.msra.mxu0 0
    %687 = vmatprep.subr.bf16.mxu0 0
    %688 = vmatpush1.bf16.msra.mxu0 0
    %689 = vmatprep.subr.bf16.mxu0 0
    %690 = vmatpush1.bf16.msra.mxu0 0
    %691 = vmatprep.subr.bf16.mxu0 0
    %692 = vmatpush1.bf16.msra.mxu0 0
    %693 = vmatprep.subr.bf16.mxu0 0
    %694 = vmatpush1.bf16.msra.mxu0 0
    %695 = vmatprep.subr.bf16.mxu0 0
    %696 = vmatpush1.bf16.msra.mxu0 0
    %697 = vmatprep.subr.bf16.mxu0 0
    %698 = vmatpush1.bf16.msra.mxu0 0
    %699 = vmatprep.subr.bf16.mxu0 0
    %700 = vmatpush1.bf16.msra.mxu0 0
    %701 = vmatprep.subr.bf16.mxu0 0
    %702 = vmatpush1.bf16.msra.mxu0 0
    %703 = vmatprep.subr.bf16.mxu0 0
    %704 = vmatpush1.bf16.msra.mxu0 0
    %705 = vmatprep.subr.bf16.mxu0 0
    %706 = vmatpush1.bf16.msra.mxu0 0
    %707 = vmatprep.subr.bf16.mxu0 0
    %708 = vmatpush1.bf16.msra.mxu0 0
    %709 = vmatprep.subr.bf16.mxu0 0
    %710 = vmatpush1.bf16.msra.mxu0 0
    %711 = vmatprep.mubr.bf16.mxu0 0
    %712 = vmatmul.mubr.bf16.gmra.mrb[0].mxu0 %v677
    %v713 = vpop.f32.mrb[0].mxu0
    %v714 = vadd.f32 0.0, %v713
    %v715 = vpop.f32.mrb[0].mxu0
    %v716 = vadd.f32 0.0, %v715
    %v717 = vpop.f32.mrb[0].mxu0
    %v718 = vpop.f32.mrb[0].mxu0
    %719 = vdwg.mxu0
    %v720 = vld [vmem:[#allocation2 + $0x8] sm:$0x3]
    %v721 = vadd.f32 %v720, %v714
    %v722 = vxor.u32 %v721, 2147483648
    %v723 = vmul.f32 %v722, 1.442695
    %v724 = vpow.pop %v723
    %v725 = vadd.f32 %v724, 1.0
    %v726 = vrcp.pop %v725
    %v727 = vmul.f32 1.0, %v726
    %729 = vrot.lane.b32.xlu0 %v721, 32
    %v730 = vpop.permute.xlu0 %729
    %v732 = vmul.f32 %v727, %v730
    %734 = vrot.lane.b32.xlu0 %v732, 64
    %v735 = vpop.permute.xlu0 %734
    %v737 = vadd.f32 %v721, %v735
    %v738 = vtanh.pop %v737
    %v739 = vsub.f32 1.0, %v727
    %741 = vrot.lane.b32.xlu0 %v738, 96
    %v742 = vpop.permute.xlu0 %741
    %v744 = vmul.f32 %v739, %v742
    %v745 = vmul.f32 %v727, %v592
    %v746 = vadd.f32 %v744, %v745
    %v747 = vpack.c.bf16 %v666, %v666
    %749 = vrot.lane.b32.xlu0 %v747, 96
    %v750 = vpop.permute.xlu0 %749
    %v752 = vsel %vm199, %v750, 0
    %754 = vmatprep.subr.bf16.mxu0 0
    %755 = vmatpush1.bf16.msra.mxu0 %v280
    %756 = vmatprep.subr.bf16.mxu0 0
    %757 = vmatpush1.bf16.msra.mxu0 %v281
    %758 = vmatprep.subr.bf16.mxu0 0
    %759 = vmatpush1.bf16.msra.mxu0 0
    %760 = vmatprep.subr.bf16.mxu0 0
    %761 = vmatpush1.bf16.msra.mxu0 0
    %762 = vmatprep.subr.bf16.mxu0 0
    %763 = vmatpush1.bf16.msra.mxu0 0
    %764 = vmatprep.subr.bf16.mxu0 0
    %765 = vmatpush1.bf16.msra.mxu0 0
    %766 = vmatprep.subr.bf16.mxu0 0
    %767 = vmatpush1.bf16.msra.mxu0 0
    %768 = vmatprep.subr.bf16.mxu0 0
    %769 = vmatpush1.bf16.msra.mxu0 0
    %770 = vmatprep.subr.bf16.mxu0 0
    %771 = vmatpush1.bf16.msra.mxu0 0
    %772 = vmatprep.subr.bf16.mxu0 0
    %773 = vmatpush1.bf16.msra.mxu0 0
    %774 = vmatprep.subr.bf16.mxu0 0
    %775 = vmatpush1.bf16.msra.mxu0 0
    %776 = vmatprep.subr.bf16.mxu0 0
    %777 = vmatpush1.bf16.msra.mxu0 0
    %778 = vmatprep.subr.bf16.mxu0 0
    %779 = vmatpush1.bf16.msra.mxu0 0
    %780 = vmatprep.subr.bf16.mxu0 0
    %781 = vmatpush1.bf16.msra.mxu0 0
    %782 = vmatprep.subr.bf16.mxu0 0
    %783 = vmatpush1.bf16.msra.mxu0 0
    %784 = vmatprep.subr.bf16.mxu0 0
    %785 = vmatpush1.bf16.msra.mxu0 0
    %786 = vmatprep.mubr.bf16.mxu0 0
    %787 = vmatmul.mubr.bf16.gmra.mrb[0].mxu0 %v752
    %v788 = vpop.f32.mrb[0].mxu0
    %v789 = vadd.f32 0.0, %v788
    %v790 = vpop.f32.mrb[0].mxu0
    %v791 = vpop.f32.mrb[0].mxu0
    %v792 = vpop.f32.mrb[0].mxu0
    %793 = vdwg.mxu0
    %v794 = vadd.f32 %v716, %v789
    %v795 = vadd.f32 %v794, %v146
    %v796 = vxor.u32 %v795, 2147483648
    %v797 = vmul.f32 %v796, 1.442695
    %v798 = vpow.pop %v797
    %v799 = vadd.f32 %v798, 1.0
    %v800 = vrcp.pop %v799
    %v801 = vmul.f32 1.0, %v800
    %803 = vrot.lane.b32.xlu0 %v795, 32
    %v804 = vpop.permute.xlu0 %803
    %v806 = vmul.f32 %v801, %v804
    %808 = vrot.lane.b32.xlu0 %v806, 64
    %v809 = vpop.permute.xlu0 %808
    %v811 = vadd.f32 %v795, %v809
    %v812 = vtanh.pop %v811
    %v813 = vsub.f32 1.0, %v801
    %815 = vrot.lane.b32.xlu0 %v812, 96
    %v816 = vpop.permute.xlu0 %815
    %v818 = vmul.f32 %v813, %v816
    %v819 = vmul.f32 %v801, %v666
    %v820 = vadd.f32 %v818, %v819
    %822 = vrot.lane.b32.xlu0 %v820, 96
    %v823 = vpop.permute.xlu0 %822
    %825 = vst.msk [vmem:[%s7 + $0x6] sm:$0x3] %vm362, %v823
    %v826 = vpack.c.bf16 %v746, %v746
    %828 = vrot.lane.b32.xlu0 %v826, 96
    %v829 = vpop.permute.xlu0 %828
    %v831 = vsel %vm199, %v829, 0
    %833 = vmatprep.subr.bf16.mxu0 %v192
    %834 = vmatpush1.bf16.msra.mxu0 %v191
    %835 = vmatprep.subr.bf16.mxu0 %v194
    %836 = vmatpush1.bf16.msra.mxu0 %v193
    %837 = vmatprep.subr.bf16.mxu0 0
    %838 = vmatpush1.bf16.msra.mxu0 0
    %839 = vmatprep.subr.bf16.mxu0 0
    %840 = vmatpush1.bf16.msra.mxu0 0
    %841 = vmatprep.subr.bf16.mxu0 0
    %842 = vmatpush1.bf16.msra.mxu0 0
    %843 = vmatprep.subr.bf16.mxu0 0
    %844 = vmatpush1.bf16.msra.mxu0 0
    %845 = vmatprep.subr.bf16.mxu0 0
    %846 = vmatpush1.bf16.msra.mxu0 0
    %847 = vmatprep.subr.bf16.mxu0 0
    %848 = vmatpush1.bf16.msra.mxu0 0
    %849 = vmatprep.subr.bf16.mxu0 0
    %850 = vmatpush1.bf16.msra.mxu0 0
    %851 = vmatprep.subr.bf16.mxu0 0
    %852 = vmatpush1.bf16.msra.mxu0 0
    %853 = vmatprep.subr.bf16.mxu0 0
    %854 = vmatpush1.bf16.msra.mxu0 0
    %855 = vmatprep.subr.bf16.mxu0 0
    %856 = vmatpush1.bf16.msra.mxu0 0
    %857 = vmatprep.subr.bf16.mxu0 0
    %858 = vmatpush1.bf16.msra.mxu0 0
    %859 = vmatprep.subr.bf16.mxu0 0
    %860 = vmatpush1.bf16.msra.mxu0 0
    %861 = vmatprep.subr.bf16.mxu0 0
    %862 = vmatpush1.bf16.msra.mxu0 0
    %863 = vmatprep.subr.bf16.mxu0 0
    %864 = vmatpush1.bf16.msra.mxu0 0
    %865 = vmatprep.mubr.bf16.mxu0 0
    %866 = vmatmul.mubr.bf16.gmra.mrb[0].mxu0 %v831
    %v867 = vpop.f32.mrb[0].mxu0
    %v868 = vadd.f32 0.0, %v867
    %v869 = vpop.f32.mrb[0].mxu0
    %v870 = vadd.f32 0.0, %v869
    %v871 = vpop.f32.mrb[0].mxu0
    %v872 = vpop.f32.mrb[0].mxu0
    %873 = vdwg.mxu0
    %v874 = vld [vmem:[#allocation2 + $0xa] sm:$0x3]
    %v875 = vadd.f32 %v874, %v868
    %v876 = vxor.u32 %v875, 2147483648
    %v877 = vmul.f32 %v876, 1.442695
    %v878 = vpow.pop %v877
    %v879 = vadd.f32 %v878, 1.0
    %v880 = vrcp.pop %v879
    %v881 = vmul.f32 1.0, %v880
    %883 = vrot.lane.b32.xlu0 %v875, 32
    %v884 = vpop.permute.xlu0 %883
    %v886 = vmul.f32 %v881, %v884
    %888 = vrot.lane.b32.xlu0 %v886, 64
    %v889 = vpop.permute.xlu0 %888
    %v891 = vadd.f32 %v875, %v889
    %v892 = vtanh.pop %v891
    %v893 = vsub.f32 1.0, %v881
    %895 = vrot.lane.b32.xlu0 %v892, 96
    %v896 = vpop.permute.xlu0 %895
    %v898 = vmul.f32 %v893, %v896
    %v899 = vmul.f32 %v881, %v746
    %v900 = vadd.f32 %v898, %v899
    %v901 = vpack.c.bf16 %v820, %v820
    %903 = vrot.lane.b32.xlu0 %v901, 96
    %v904 = vpop.permute.xlu0 %903
    %v906 = vsel %vm199, %v904, 0
    %908 = vmatprep.subr.bf16.mxu0 0
    %909 = vmatpush1.bf16.msra.mxu0 %v280
    %910 = vmatprep.subr.bf16.mxu0 0
    %911 = vmatpush1.bf16.msra.mxu0 %v281
    %912 = vmatprep.subr.bf16.mxu0 0
    %913 = vmatpush1.bf16.msra.mxu0 0
    %914 = vmatprep.subr.bf16.mxu0 0
    %915 = vmatpush1.bf16.msra.mxu0 0
    %916 = vmatprep.subr.bf16.mxu0 0
    %917 = vmatpush1.bf16.msra.mxu0 0
    %918 = vmatprep.subr.bf16.mxu0 0
    %919 = vmatpush1.bf16.msra.mxu0 0
    %920 = vmatprep.subr.bf16.mxu0 0
    %921 = vmatpush1.bf16.msra.mxu0 0
    %922 = vmatprep.subr.bf16.mxu0 0
    %923 = vmatpush1.bf16.msra.mxu0 0
    %924 = vmatprep.subr.bf16.mxu0 0
    %925 = vmatpush1.bf16.msra.mxu0 0
    %926 = vmatprep.subr.bf16.mxu0 0
    %927 = vmatpush1.bf16.msra.mxu0 0
    %928 = vmatprep.subr.bf16.mxu0 0
    %929 = vmatpush1.bf16.msra.mxu0 0
    %930 = vmatprep.subr.bf16.mxu0 0
    %931 = vmatpush1.bf16.msra.mxu0 0
    %932 = vmatprep.subr.bf16.mxu0 0
    %933 = vmatpush1.bf16.msra.mxu0 0
    %934 = vmatprep.subr.bf16.mxu0 0
    %935 = vmatpush1.bf16.msra.mxu0 0
    %936 = vmatprep.subr.bf16.mxu0 0
    %937 = vmatpush1.bf16.msra.mxu0 0
    %938 = vmatprep.subr.bf16.mxu0 0
    %939 = vmatpush1.bf16.msra.mxu0 0
    %940 = vmatprep.mubr.bf16.mxu0 0
    %941 = vmatmul.mubr.bf16.gmra.mrb[0].mxu0 %v906
    %v942 = vpop.f32.mrb[0].mxu0
    %v943 = vadd.f32 0.0, %v942
    %v944 = vpop.f32.mrb[0].mxu0
    %v945 = vpop.f32.mrb[0].mxu0
    %v946 = vpop.f32.mrb[0].mxu0
    %947 = vdwg.mxu0
    %v948 = vadd.f32 %v870, %v943
    %v949 = vadd.f32 %v948, %v146
    %v950 = vxor.u32 %v949, 2147483648
    %v951 = vmul.f32 %v950, 1.442695
    %v952 = vpow.pop %v951
    %v953 = vadd.f32 %v952, 1.0
    %v954 = vrcp.pop %v953
    %v955 = vmul.f32 1.0, %v954
    %957 = vrot.lane.b32.xlu0 %v949, 32
    %v958 = vpop.permute.xlu0 %957
    %v960 = vmul.f32 %v955, %v958
    %962 = vrot.lane.b32.xlu0 %v960, 64
    %v963 = vpop.permute.xlu0 %962
    %v965 = vadd.f32 %v949, %v963
    %v966 = vtanh.pop %v965
    %v967 = vsub.f32 1.0, %v955
    %969 = vrot.lane.b32.xlu0 %v966, 96
    %v970 = vpop.permute.xlu0 %969
    %v972 = vmul.f32 %v967, %v970
    %v973 = vmul.f32 %v955, %v820
    %v974 = vadd.f32 %v972, %v973
    %976 = vrot.lane.b32.xlu0 %v974, 96
    %v977 = vpop.permute.xlu0 %976
    %979 = vst.msk [vmem:[%s7 + $0x8] sm:$0x3] %vm362, %v977
    %v980 = vpack.c.bf16 %v900, %v900
    %982 = vrot.lane.b32.xlu0 %v980, 96
    %v983 = vpop.permute.xlu0 %982
    %v985 = vsel %vm199, %v983, 0
    %987 = vmatprep.subr.bf16.mxu0 %v192
    %988 = vmatpush1.bf16.msra.mxu0 %v191
    %989 = vmatprep.subr.bf16.mxu0 %v194
    %990 = vmatpush1.bf16.msra.mxu0 %v193
    %991 = vmatprep.subr.bf16.mxu0 0
    %992 = vmatpush1.bf16.msra.mxu0 0
    %993 = vmatprep.subr.bf16.mxu0 0
    %994 = vmatpush1.bf16.msra.mxu0 0
    %995 = vmatprep.subr.bf16.mxu0 0
    %996 = vmatpush1.bf16.msra.mxu0 0
    %997 = vmatprep.subr.bf16.mxu0 0
    %998 = vmatpush1.bf16.msra.mxu0 0
    %999 = vmatprep.subr.bf16.mxu0 0
    %1000 = vmatpush1.bf16.msra.mxu0 0
    %1001 = vmatprep.subr.bf16.mxu0 0
    %1002 = vmatpush1.bf16.msra.mxu0 0
    %1003 = vmatprep.subr.bf16.mxu0 0
    %1004 = vmatpush1.bf16.msra.mxu0 0
    %1005 = vmatprep.subr.bf16.mxu0 0
    %1006 = vmatpush1.bf16.msra.mxu0 0
    %1007 = vmatprep.subr.bf16.mxu0 0
    %1008 = vmatpush1.bf16.msra.mxu0 0
    %1009 = vmatprep.subr.bf16.mxu0 0
    %1010 = vmatpush1.bf16.msra.mxu0 0
    %1011 = vmatprep.subr.bf16.mxu0 0
    %1012 = vmatpush1.bf16.msra.mxu0 0
    %1013 = vmatprep.subr.bf16.mxu0 0
    %1014 = vmatpush1.bf16.msra.mxu0 0
    %1015 = vmatprep.subr.bf16.mxu0 0
    %1016 = vmatpush1.bf16.msra.mxu0 0
    %1017 = vmatprep.subr.bf16.mxu0 0
    %1018 = vmatpush1.bf16.msra.mxu0 0
    %1019 = vmatprep.mubr.bf16.mxu0 0
    %1020 = vmatmul.mubr.bf16.gmra.mrb[0].mxu0 %v985
    %v1021 = vpop.f32.mrb[0].mxu0
    %v1022 = vadd.f32 0.0, %v1021
    %v1023 = vpop.f32.mrb[0].mxu0
    %v1024 = vadd.f32 0.0, %v1023
    %v1025 = vpop.f32.mrb[0].mxu0
    %v1026 = vpop.f32.mrb[0].mxu0
    %1027 = vdwg.mxu0
    %v1028 = vld [vmem:[#allocation2 + $0xc] sm:$0x3]
    %v1029 = vadd.f32 %v1028, %v1022
    %v1030 = vxor.u32 %v1029, 2147483648
    %v1031 = vmul.f32 %v1030, 1.442695
    %v1032 = vpow.pop %v1031
    %v1033 = vadd.f32 %v1032, 1.0
    %v1034 = vrcp.pop %v1033
    %v1035 = vmul.f32 1.0, %v1034
    %1037 = vrot.lane.b32.xlu0 %v1029, 32
    %v1038 = vpop.permute.xlu0 %1037
    %v1040 = vmul.f32 %v1035, %v1038
    %1042 = vrot.lane.b32.xlu0 %v1040, 64
    %v1043 = vpop.permute.xlu0 %1042
    %v1045 = vadd.f32 %v1029, %v1043
    %v1046 = vtanh.pop %v1045
    %v1047 = vsub.f32 1.0, %v1035
    %1049 = vrot.lane.b32.xlu0 %v1046, 96
    %v1050 = vpop.permute.xlu0 %1049
    %v1052 = vmul.f32 %v1047, %v1050
    %v1053 = vmul.f32 %v1035, %v900
    %v1054 = vadd.f32 %v1052, %v1053
    %v1055 = vpack.c.bf16 %v974, %v974
    %1057 = vrot.lane.b32.xlu0 %v1055, 96
    %v1058 = vpop.permute.xlu0 %1057
    %v1060 = vsel %vm199, %v1058, 0
    %1062 = vmatprep.subr.bf16.mxu0 0
    %1063 = vmatpush1.bf16.msra.mxu0 %v280
    %1064 = vmatprep.subr.bf16.mxu0 0
    %1065 = vmatpush1.bf16.msra.mxu0 %v281
    %1066 = vmatprep.subr.bf16.mxu0 0
    %1067 = vmatpush1.bf16.msra.mxu0 0
    %1068 = vmatprep.subr.bf16.mxu0 0
    %1069 = vmatpush1.bf16.msra.mxu0 0
    %1070 = vmatprep.subr.bf16.mxu0 0
    %1071 = vmatpush1.bf16.msra.mxu0 0
    %1072 = vmatprep.subr.bf16.mxu0 0
    %1073 = vmatpush1.bf16.msra.mxu0 0
    %1074 = vmatprep.subr.bf16.mxu0 0
    %1075 = vmatpush1.bf16.msra.mxu0 0
    %1076 = vmatprep.subr.bf16.mxu0 0
    %1077 = vmatpush1.bf16.msra.mxu0 0
    %1078 = vmatprep.subr.bf16.mxu0 0
    %1079 = vmatpush1.bf16.msra.mxu0 0
    %1080 = vmatprep.subr.bf16.mxu0 0
    %1081 = vmatpush1.bf16.msra.mxu0 0
    %1082 = vmatprep.subr.bf16.mxu0 0
    %1083 = vmatpush1.bf16.msra.mxu0 0
    %1084 = vmatprep.subr.bf16.mxu0 0
    %1085 = vmatpush1.bf16.msra.mxu0 0
    %1086 = vmatprep.subr.bf16.mxu0 0
    %1087 = vmatpush1.bf16.msra.mxu0 0
    %1088 = vmatprep.subr.bf16.mxu0 0
    %1089 = vmatpush1.bf16.msra.mxu0 0
    %1090 = vmatprep.subr.bf16.mxu0 0
    %1091 = vmatpush1.bf16.msra.mxu0 0
    %1092 = vmatprep.subr.bf16.mxu0 0
    %1093 = vmatpush1.bf16.msra.mxu0 0
    %1094 = vmatprep.mubr.bf16.mxu0 0
    %1095 = vmatmul.mubr.bf16.gmra.mrb[0].mxu0 %v1060
    %v1096 = vpop.f32.mrb[0].mxu0
    %v1097 = vadd.f32 0.0, %v1096
    %v1098 = vpop.f32.mrb[0].mxu0
    %v1099 = vpop.f32.mrb[0].mxu0
    %v1100 = vpop.f32.mrb[0].mxu0
    %1101 = vdwg.mxu0
    %v1102 = vadd.f32 %v1024, %v1097
    %v1103 = vadd.f32 %v1102, %v146
    %v1104 = vxor.u32 %v1103, 2147483648
    %v1105 = vmul.f32 %v1104, 1.442695
    %v1106 = vpow.pop %v1105
    %v1107 = vadd.f32 %v1106, 1.0
    %v1108 = vrcp.pop %v1107
    %v1109 = vmul.f32 1.0, %v1108
    %1111 = vrot.lane.b32.xlu0 %v1103, 32
    %v1112 = vpop.permute.xlu0 %1111
    %v1114 = vmul.f32 %v1109, %v1112
    %1116 = vrot.lane.b32.xlu0 %v1114, 64
    %v1117 = vpop.permute.xlu0 %1116
    %v1119 = vadd.f32 %v1103, %v1117
    %v1120 = vtanh.pop %v1119
    %v1121 = vsub.f32 1.0, %v1109
    %1123 = vrot.lane.b32.xlu0 %v1120, 96
    %v1124 = vpop.permute.xlu0 %1123
    %v1126 = vmul.f32 %v1121, %v1124
    %v1127 = vmul.f32 %v1109, %v974
    %v1128 = vadd.f32 %v1126, %v1127
    %1130 = vrot.lane.b32.xlu0 %v1128, 96
    %v1131 = vpop.permute.xlu0 %1130
    %1133 = vst.msk [vmem:[%s7 + $0xa] sm:$0x3] %vm362, %v1131
    %v1134 = vpack.c.bf16 %v1054, %v1054
    %1136 = vrot.lane.b32.xlu0 %v1134, 96
    %v1137 = vpop.permute.xlu0 %1136
    %v1139 = vsel %vm199, %v1137, 0
    %1141 = vmatprep.subr.bf16.mxu0 %v192
    %1142 = vmatpush1.bf16.msra.mxu0 %v191
    %1143 = vmatprep.subr.bf16.mxu0 %v194
    %1144 = vmatpush1.bf16.msra.mxu0 %v193
    %1145 = vmatprep.subr.bf16.mxu0 0
    %1146 = vmatpush1.bf16.msra.mxu0 0
    %1147 = vmatprep.subr.bf16.mxu0 0
    %1148 = vmatpush1.bf16.msra.mxu0 0
    %1149 = vmatprep.subr.bf16.mxu0 0
    %1150 = vmatpush1.bf16.msra.mxu0 0
    %1151 = vmatprep.subr.bf16.mxu0 0
    %1152 = vmatpush1.bf16.msra.mxu0 0
    %1153 = vmatprep.subr.bf16.mxu0 0
    %1154 = vmatpush1.bf16.msra.mxu0 0
    %1155 = vmatprep.subr.bf16.mxu0 0
    %1156 = vmatpush1.bf16.msra.mxu0 0
    %1157 = vmatprep.subr.bf16.mxu0 0
    %1158 = vmatpush1.bf16.msra.mxu0 0
    %1159 = vmatprep.subr.bf16.mxu0 0
    %1160 = vmatpush1.bf16.msra.mxu0 0
    %1161 = vmatprep.subr.bf16.mxu0 0
    %1162 = vmatpush1.bf16.msra.mxu0 0
    %1163 = vmatprep.subr.bf16.mxu0 0
    %1164 = vmatpush1.bf16.msra.mxu0 0
    %1165 = vmatprep.subr.bf16.mxu0 0
    %1166 = vmatpush1.bf16.msra.mxu0 0
    %1167 = vmatprep.subr.bf16.mxu0 0
    %1168 = vmatpush1.bf16.msra.mxu0 0
    %1169 = vmatprep.subr.bf16.mxu0 0
    %1170 = vmatpush1.bf16.msra.mxu0 0
    %1171 = vmatprep.subr.bf16.mxu0 0
    %1172 = vmatpush1.bf16.msra.mxu0 0
    %1173 = vmatprep.mubr.bf16.mxu0 0
    %1174 = vmatmul.mubr.bf16.gmra.mrb[0].mxu0 %v1139
    %v1175 = vpop.f32.mrb[0].mxu0
    %v1176 = vadd.f32 0.0, %v1175
    %v1177 = vpop.f32.mrb[0].mxu0
    %v1178 = vadd.f32 0.0, %v1177
    %v1179 = vpop.f32.mrb[0].mxu0
    %v1180 = vpop.f32.mrb[0].mxu0
    %1181 = vdwg.mxu0
    %v1182 = vld [vmem:[#allocation2 + $0xe] sm:$0x3]
    %v1183 = vadd.f32 %v1182, %v1176
    %v1184 = vxor.u32 %v1183, 2147483648
    %v1185 = vmul.f32 %v1184, 1.442695
    %v1186 = vpow.pop %v1185
    %v1187 = vadd.f32 %v1186, 1.0
    %v1188 = vrcp.pop %v1187
    %v1189 = vmul.f32 1.0, %v1188
    %1191 = vrot.lane.b32.xlu0 %v1183, 32
    %v1192 = vpop.permute.xlu0 %1191
    %v1194 = vmul.f32 %v1189, %v1192
    %1196 = vrot.lane.b32.xlu0 %v1194, 64
    %v1197 = vpop.permute.xlu0 %1196
    %v1199 = vadd.f32 %v1183, %v1197
    %v1200 = vtanh.pop %v1199
    %v1201 = vsub.f32 1.0, %v1189
    %1203 = vrot.lane.b32.xlu0 %v1200, 96
    %v1204 = vpop.permute.xlu0 %1203
    %v1206 = vmul.f32 %v1201, %v1204
    %v1207 = vmul.f32 %v1189, %v1054
    %v1208 = vadd.f32 %v1206, %v1207
    %v1209 = vpack.c.bf16 %v1128, %v1128
    %1211 = vrot.lane.b32.xlu0 %v1209, 96
    %v1212 = vpop.permute.xlu0 %1211
    %v1214 = vsel %vm199, %v1212, 0
    %1216 = vmatprep.subr.bf16.mxu0 0
    %1217 = vmatpush1.bf16.msra.mxu0 %v280
    %1218 = vmatprep.subr.bf16.mxu0 0
    %1219 = vmatpush1.bf16.msra.mxu0 %v281
    %1220 = vmatprep.subr.bf16.mxu0 0
    %1221 = vmatpush1.bf16.msra.mxu0 0
    %1222 = vmatprep.subr.bf16.mxu0 0
    %1223 = vmatpush1.bf16.msra.mxu0 0
    %1224 = vmatprep.subr.bf16.mxu0 0
    %1225 = vmatpush1.bf16.msra.mxu0 0
    %1226 = vmatprep.subr.bf16.mxu0 0
    %1227 = vmatpush1.bf16.msra.mxu0 0
    %1228 = vmatprep.subr.bf16.mxu0 0
    %1229 = vmatpush1.bf16.msra.mxu0 0
    %1230 = vmatprep.subr.bf16.mxu0 0
    %1231 = vmatpush1.bf16.msra.mxu0 0
    %1232 = vmatprep.subr.bf16.mxu0 0
    %1233 = vmatpush1.bf16.msra.mxu0 0
    %1234 = vmatprep.subr.bf16.mxu0 0
    %1235 = vmatpush1.bf16.msra.mxu0 0
    %1236 = vmatprep.subr.bf16.mxu0 0
    %1237 = vmatpush1.bf16.msra.mxu0 0
    %1238 = vmatprep.subr.bf16.mxu0 0
    %1239 = vmatpush1.bf16.msra.mxu0 0
    %1240 = vmatprep.subr.bf16.mxu0 0
    %1241 = vmatpush1.bf16.msra.mxu0 0
    %1242 = vmatprep.subr.bf16.mxu0 0
    %1243 = vmatpush1.bf16.msra.mxu0 0
    %1244 = vmatprep.subr.bf16.mxu0 0
    %1245 = vmatpush1.bf16.msra.mxu0 0
    %1246 = vmatprep.subr.bf16.mxu0 0
    %1247 = vmatpush1.bf16.msra.mxu0 0
    %1248 = vmatprep.mubr.bf16.mxu0 0
    %1249 = vmatmul.mubr.bf16.gmra.mrb[0].mxu0 %v1214
    %v1250 = vpop.f32.mrb[0].mxu0
    %v1251 = vadd.f32 0.0, %v1250
    %v1252 = vpop.f32.mrb[0].mxu0
    %v1253 = vpop.f32.mrb[0].mxu0
    %v1254 = vpop.f32.mrb[0].mxu0
    %1255 = vdwg.mxu0
    %v1256 = vadd.f32 %v1178, %v1251
    %v1257 = vadd.f32 %v1256, %v146
    %v1258 = vxor.u32 %v1257, 2147483648
    %v1259 = vmul.f32 %v1258, 1.442695
    %v1260 = vpow.pop %v1259
    %v1261 = vadd.f32 %v1260, 1.0
    %v1262 = vrcp.pop %v1261
    %v1263 = vmul.f32 1.0, %v1262
    %1265 = vrot.lane.b32.xlu0 %v1257, 32
    %v1266 = vpop.permute.xlu0 %1265
    %v1268 = vmul.f32 %v1263, %v1266
    %1270 = vrot.lane.b32.xlu0 %v1268, 64
    %v1271 = vpop.permute.xlu0 %1270
    %v1273 = vadd.f32 %v1257, %v1271
    %v1274 = vtanh.pop %v1273
    %v1275 = vsub.f32 1.0, %v1263
    %1277 = vrot.lane.b32.xlu0 %v1274, 96
    %v1278 = vpop.permute.xlu0 %1277
    %v1280 = vmul.f32 %v1275, %v1278
    %v1281 = vmul.f32 %v1263, %v1128
    %v1282 = vadd.f32 %v1280, %v1281
    %1284 = vrot.lane.b32.xlu0 %v1282, 96
    %v1285 = vpop.permute.xlu0 %1284
    %1287 = vst.msk [vmem:[%s7 + $0xc] sm:$0x3] %vm362, %v1285
    %v1288 = vpack.c.bf16 %v1208, %v1208
    %1290 = vrot.lane.b32.xlu0 %v1288, 96
    %v1291 = vpop.permute.xlu0 %1290
    %v1293 = vsel %vm199, %v1291, 0
    %1295 = vmatprep.subr.bf16.mxu0 %v192
    %1296 = vmatpush1.bf16.msra.mxu0 %v191
    %1297 = vmatprep.subr.bf16.mxu0 %v194
    %1298 = vmatpush1.bf16.msra.mxu0 %v193
    %1299 = vmatprep.subr.bf16.mxu0 0
    %1300 = vmatpush1.bf16.msra.mxu0 0
    %1301 = vmatprep.subr.bf16.mxu0 0
    %1302 = vmatpush1.bf16.msra.mxu0 0
    %1303 = vmatprep.subr.bf16.mxu0 0
    %1304 = vmatpush1.bf16.msra.mxu0 0
    %1305 = vmatprep.subr.bf16.mxu0 0
    %1306 = vmatpush1.bf16.msra.mxu0 0
    %1307 = vmatprep.subr.bf16.mxu0 0
    %1308 = vmatpush1.bf16.msra.mxu0 0
    %1309 = vmatprep.subr.bf16.mxu0 0
    %1310 = vmatpush1.bf16.msra.mxu0 0
    %1311 = vmatprep.subr.bf16.mxu0 0
    %1312 = vmatpush1.bf16.msra.mxu0 0
    %1313 = vmatprep.subr.bf16.mxu0 0
    %1314 = vmatpush1.bf16.msra.mxu0 0
    %1315 = vmatprep.subr.bf16.mxu0 0
    %1316 = vmatpush1.bf16.msra.mxu0 0
    %1317 = vmatprep.subr.bf16.mxu0 0
    %1318 = vmatpush1.bf16.msra.mxu0 0
    %1319 = vmatprep.subr.bf16.mxu0 0
    %1320 = vmatpush1.bf16.msra.mxu0 0
    %1321 = vmatprep.subr.bf16.mxu0 0
    %1322 = vmatpush1.bf16.msra.mxu0 0
    %1323 = vmatprep.subr.bf16.mxu0 0
    %1324 = vmatpush1.bf16.msra.mxu0 0
    %1325 = vmatprep.subr.bf16.mxu0 0
    %1326 = vmatpush1.bf16.msra.mxu0 0
    %1327 = vmatprep.mubr.bf16.mxu0 0
    %1328 = vmatmul.mubr.bf16.gmra.mrb[0].mxu0 %v1293
    %v1329 = vpop.f32.mrb[0].mxu0
    %v1330 = vpop.f32.mrb[0].mxu0
    %v1331 = vadd.f32 0.0, %v1330
    %v1332 = vpop.f32.mrb[0].mxu0
    %v1333 = vpop.f32.mrb[0].mxu0
    %1334 = vdwg.mxu0
    %v1335 = vpack.c.bf16 %v1282, %v1282
    %1337 = vrot.lane.b32.xlu0 %v1335, 96
    %v1338 = vpop.permute.xlu0 %1337
    %v1340 = vsel %vm199, %v1338, 0
    %1342 = vmatprep.subr.bf16.mxu0 0
    %1343 = vmatpush1.bf16.msra.mxu0 %v280
    %1344 = vmatprep.subr.bf16.mxu0 0
    %1345 = vmatpush1.bf16.msra.mxu0 %v281
    %1346 = vmatprep.subr.bf16.mxu0 0
    %1347 = vmatpush1.bf16.msra.mxu0 0
    %1348 = vmatprep.subr.bf16.mxu0 0
    %1349 = vmatpush1.bf16.msra.mxu0 0
    %1350 = vmatprep.subr.bf16.mxu0 0
    %1351 = vmatpush1.bf16.msra.mxu0 0
    %1352 = vmatprep.subr.bf16.mxu0 0
    %1353 = vmatpush1.bf16.msra.mxu0 0
    %1354 = vmatprep.subr.bf16.mxu0 0
    %1355 = vmatpush1.bf16.msra.mxu0 0
    %1356 = vmatprep.subr.bf16.mxu0 0
    %1357 = vmatpush1.bf16.msra.mxu0 0
    %1358 = vmatprep.subr.bf16.mxu0 0
    %1359 = vmatpush1.bf16.msra.mxu0 0
    %1360 = vmatprep.subr.bf16.mxu0 0
    %1361 = vmatpush1.bf16.msra.mxu0 0
    %1362 = vmatprep.subr.bf16.mxu0 0
    %1363 = vmatpush1.bf16.msra.mxu0 0
    %1364 = vmatprep.subr.bf16.mxu0 0
    %1365 = vmatpush1.bf16.msra.mxu0 0
    %1366 = vmatprep.subr.bf16.mxu0 0
    %1367 = vmatpush1.bf16.msra.mxu0 0
    %1368 = vmatprep.subr.bf16.mxu0 0
    %1369 = vmatpush1.bf16.msra.mxu0 0
    %1370 = vmatprep.subr.bf16.mxu0 0
    %1371 = vmatpush1.bf16.msra.mxu0 0
    %1372 = vmatprep.subr.bf16.mxu0 0
    %1373 = vmatpush1.bf16.msra.mxu0 0
    %1374 = vmatprep.mubr.bf16.mxu0 0
    %1375 = vmatmul.mubr.bf16.gmra.mrb[0].mxu0 %v1340
    %v1376 = vpop.f32.mrb[0].mxu0
    %v1377 = vadd.f32 0.0, %v1376
    %v1378 = vpop.f32.mrb[0].mxu0
    %v1379 = vpop.f32.mrb[0].mxu0
    %v1380 = vpop.f32.mrb[0].mxu0
    %1381 = vdwg.mxu0
    %v1382 = vadd.f32 %v1331, %v1377
    %v1383 = vadd.f32 %v1382, %v146
    %v1384 = vxor.u32 %v1383, 2147483648
    %v1385 = vmul.f32 %v1384, 1.442695
    %v1386 = vpow.pop %v1385
    %v1387 = vadd.f32 %v1386, 1.0
    %v1388 = vrcp.pop %v1387
    %v1389 = vmul.f32 1.0, %v1388
    %1391 = vrot.lane.b32.xlu0 %v1383, 32
    %v1392 = vpop.permute.xlu0 %1391
    %v1394 = vmul.f32 %v1389, %v1392
    %1396 = vrot.lane.b32.xlu0 %v1394, 64
    %v1397 = vpop.permute.xlu0 %1396
    %v1399 = vadd.f32 %v1383, %v1397
    %v1400 = vtanh.pop %v1399
    %v1401 = vsub.f32 1.0, %v1389
    %1403 = vrot.lane.b32.xlu0 %v1400, 96
    %v1404 = vpop.permute.xlu0 %1403
    %v1406 = vmul.f32 %v1401, %v1404
    %v1407 = vmul.f32 %v1389, %v1282
    %v1408 = vadd.f32 %v1406, %v1407
    %1410 = vrot.lane.b32.xlu0 %v1408, 96
    %v1411 = vpop.permute.xlu0 %1410
    %1413 = vst.msk [vmem:[%s7 + $0xe] sm:$0x3] %vm362, %v1411
    // Predicated region
    $region42: #{encoder_rnn_forward.1} parent=1 // pred_check
      _
    $region43: #{encoder_rnn_forward.1} parent=1 // pred_check_branch
      %1415 = sbr.rel (0) target = $region45
    $region44: #{encoder_rnn_forward.1} parent=1 // pred_region
      _
    $region45: #{encoder_rnn_forward.1} parent=1 // pred_fallthru
      _
    // Predicated region
    $region46: #{encoder_rnn_forward.1} parent=1 // pred_check
      _
    $region47: #{encoder_rnn_forward.1} parent=1 // pred_check_branch
      %1417 = sbr.rel (0) target = $region49
    $region48: #{encoder_rnn_forward.1} parent=1 // pred_region
      _
    $region49: #{encoder_rnn_forward.1} parent=1 // pred_fallthru
      _
    %1418 = vsyncpa [#allocation4], 1
    %1419 = vsyncpa [#allocation6], 1

</llo_original>
